<compile_context>
chip_gen: v5e
topology: v5e:2x2
jax: 0.10.0
libtpu: 0.0.40
codegen_flags: <defaults>
</compile_context>

<pallas_src>
import jax
import jax.numpy as jnp
from jax.experimental import pallas as pl
from jax.experimental.pallas import tpu as pltpu

HIDDEN = 64          # self.hidden_size
FC_DIM = 128         # self.fc out_features
FC2_DIM = 64         # self.fc2 out_features
N_STATES = 8         # len(CARE_STATES) = 2**3
NUM_QUBITS_AFTER_TRANSPILE = 4
INPUT_SIZE = NUM_QUBITS_AFTER_TRANSPILE * 5   # LSTM input_size

HP = 128             # per-gate lane-padded hidden width (H=64 in lanes 0..63)
OUT_PAD = 128        # lane-dense output width (N_STATES=8 in lanes 0..7)


# ---------------------------------------------------------------------------
# Kernel
# ---------------------------------------------------------------------------
def _lstm_head_kernel(x_ref,       # (T*Bp, F)     time-major, batch-padded input
                      wih_ref,     # (F, 4*HP)     W_ih^T, gate-column padded
                      whh_ref,     # (HP, 4*HP)    W_hh^T, gate-column + row padded
                      b_ref,       # (1, 4*HP)     b_ih + b_hh, gate padded (f32)
                      whead_ref,   # (HP, OUT_PAD) folded fc@fc2@fc4 head
                      bhead_ref,   # (1, OUT_PAD)  folded head bias (f32)
                      out_ref,     # (Bp, OUT_PAD)
                      gx_ref):     # (T*Bp, 4*HP)  f32 VMEM scratch
    Bp = out_ref.shape[0]
    Hp = whh_ref.shape[0]
    T = x_ref.shape[0] // Bp
    acc = jnp.float32

    # --- input projection for ALL timesteps in one MXU push, parked in VMEM --
    gx_ref[...] = (jnp.dot(x_ref[...], wih_ref[...], preferred_element_type=acc)
                   + b_ref[...])
    # gx rows [t*Bp:(t+1)*Bp] belong to timestep t.

    w_hh = whh_ref[...]
    h = jnp.zeros((Bp, Hp), acc)
    c = jnp.zeros((Bp, Hp), acc)

    # --- fully-unrolled LSTM recurrence (T static at trace time) -------------
    # Gate blocks are 128-lane aligned: i=[0:Hp], f=[Hp:2Hp], g=[2Hp:3Hp],
    # o=[3Hp:4Hp]. Padded lanes (64..127 of each block) stay exactly zero:
    # padded weight/bias columns and Whh rows are zero -> gates=0 ->
    # sigmoid(0)*tanh(0) chain keeps c/h padded lanes at 0.
    for t in range(T):
        gates = (gx_ref[t * Bp:(t + 1) * Bp, :]
                 + jnp.dot(h.astype(w_hh.dtype), w_hh,
                           preferred_element_type=acc))          # (Bp, 4*Hp)
        i_g = jax.nn.sigmoid(gates[:, 0 * Hp:1 * Hp])
        f_g = jax.nn.sigmoid(gates[:, 1 * Hp:2 * Hp])
        g_g = jnp.tanh(gates[:, 2 * Hp:3 * Hp])
        o_g = jax.nn.sigmoid(gates[:, 3 * Hp:4 * Hp])
        c = f_g * c + i_g * g_g
        h = o_g * jnp.tanh(c)

    # --- folded linear head (fc -> fc2 -> fc4), one matmul -------------------
    y = jnp.dot(h.astype(whead_ref.dtype), whead_ref[...],
                preferred_element_type=acc) + bhead_ref[...]
    out_ref[...] = y.astype(out_ref.dtype)


# ---------------------------------------------------------------------------
# One-time parameter preparation (hoisted out of the inference path)
# ---------------------------------------------------------------------------
def prepare_params(params, matmul_dtype=jnp.bfloat16):
    """Pad / fold / cast all weights ONCE; returns device arrays ready for the
    kernel so per-call inference does zero weight preprocessing."""
    H, Hp = HIDDEN, HP

    def pad_gate_cols(w_t):                              # (K, 4H) -> (K, 4*Hp)
        K = w_t.shape[0]
        w4 = w_t.reshape(K, 4, H)
        return jnp.pad(w4, ((0, 0), (0, 0), (0, Hp - H))).reshape(K, 4 * Hp)

    wih_t = pad_gate_cols(params["w_ih"].T)                          # (F, 4*Hp)
    whh_t = pad_gate_cols(params["w_hh"].T)                          # (H, 4*Hp)
    whh_t = jnp.pad(whh_t, ((0, Hp - H), (0, 0)))                    # (Hp, 4*Hp)
    b4 = (params["b_ih"] + params["b_hh"]).reshape(4, H)
    b = jnp.pad(b4, ((0, 0), (0, Hp - H))).reshape(1, 4 * Hp)        # (1, 4*Hp)

    # fold fc -> fc2 -> fc4 into one linear (exact: no activations between,
    # dropout = identity at inference).
    w1, w2, w3 = params["fc_w"].T, params["fc2_w"].T, params["fc4_w"].T
    w_head = w1 @ w2 @ w3                                            # (H, N_STATES)
    b_head = ((params["fc_b"] @ w2 + params["fc2_b"]) @ w3
              + params["fc4_b"])                                     # (N_STATES,)
    w_head = jnp.pad(w_head, ((0, Hp - H), (0, OUT_PAD - N_STATES)))
    b_head = jnp.pad(b_head.reshape(1, N_STATES),
                     ((0, 0), (0, OUT_PAD - N_STATES)))

    prepared = {
        "wih_t": wih_t.astype(matmul_dtype),
        "whh_t": whh_t.astype(matmul_dtype),
        "b": b.astype(jnp.float32),
        "w_head": w_head.astype(matmul_dtype),
        "b_head": b_head.astype(jnp.float32),
    }
    # Force materialization now so nothing is recomputed per call.
    return {k: jax.block_until_ready(v) for k, v in prepared.items()}


# ---------------------------------------------------------------------------
# Jitted forward (x prep + pallas_call fused under one jit)
# ---------------------------------------------------------------------------
@jax.jit
def _forward_impl(x, wih_t, whh_t, b, w_head, b_head):
    B, T = x.shape[0], x.shape[1]
    x = x.reshape(B, T, -1).astype(jnp.float32)          # (B, T, F)
    F = x.shape[-1]
    matmul_dtype = wih_t.dtype
    Bp = max(8, ((B + 7) // 8) * 8)                      # sublane-padded batch

    # time-major + batch padding, flattened so the input projection is ONE dot.
    x_tm = jnp.transpose(x, (1, 0, 2))                   # (T, B, F)
    x_tm = jnp.pad(x_tm, ((0, 0), (0, Bp - B), (0, 0)))  # (T, Bp, F)
    x_flat = x_tm.reshape(T * Bp, F).astype(matmul_dtype)

    vmem = pl.BlockSpec(memory_space=pltpu.MemorySpace.VMEM)
    out = pl.pallas_call(
        _lstm_head_kernel,
        out_shape=jax.ShapeDtypeStruct((Bp, OUT_PAD), jnp.float32),
        in_specs=[vmem] * 6,
        out_specs=vmem,
        scratch_shapes=[pltpu.VMEM((T * Bp, 4 * HP), jnp.float32)],
    )(x_flat, wih_t, whh_t, b, w_head, b_head)
    return out[:B, :N_STATES]


def enhanced_rnn_forward(x, prepared):
    """x: (B, T, ...) — trailing dims flattened to F = INPUT_SIZE, like
    x.view(B, T, -1). `prepared` comes from prepare_params()."""
    return _forward_impl(x, prepared["wih_t"], prepared["whh_t"], prepared["b"],
                         prepared["w_head"], prepared["b_head"])


# ---------------------------------------------------------------------------
# Reference + init
# ---------------------------------------------------------------------------
def init_params(key):
    """Deterministic parameter init mimicking PyTorch default uniform init."""
    ks = jax.random.split(key, 12)
    kH = 1.0 / jnp.sqrt(HIDDEN)

    def unif(k, shape, bound):
        return jax.random.uniform(k, shape, jnp.float32, -bound, bound)

    return {
        # LSTM (PyTorch layout: weight_ih (4H, F), weight_hh (4H, H))
        "w_ih": unif(ks[0], (4 * HIDDEN, INPUT_SIZE), kH),
        "w_hh": unif(ks[1], (4 * HIDDEN, HIDDEN), kH),
        "b_ih": unif(ks[2], (4 * HIDDEN,), kH),
        "b_hh": unif(ks[3], (4 * HIDDEN,), kH),
        # fc: 64 -> 128
        "fc_w": unif(ks[4], (FC_DIM, HIDDEN), 1.0 / jnp.sqrt(HIDDEN)),
        "fc_b": unif(ks[5], (FC_DIM,), 1.0 / jnp.sqrt(HIDDEN)),
        # fc2: 128 -> 64
        "fc2_w": unif(ks[6], (FC2_DIM, FC_DIM), 1.0 / jnp.sqrt(FC_DIM)),
        "fc2_b": unif(ks[7], (FC2_DIM,), 1.0 / jnp.sqrt(FC_DIM)),
        # fc4: 64 -> N_STATES
        "fc4_w": unif(ks[8], (N_STATES, FC2_DIM), 1.0 / jnp.sqrt(FC2_DIM)),
        "fc4_b": unif(ks[9], (N_STATES,), 1.0 / jnp.sqrt(FC2_DIM)),
    }


def _reference_forward(x, params):
    """Pure-JAX reference of the PyTorch forward, for a sanity check."""
    B, T = x.shape[0], x.shape[1]
    x = x.reshape(B, T, -1).astype(jnp.float32)
    H = HIDDEN
    w_ih, w_hh = params["w_ih"], params["w_hh"]
    b = params["b_ih"] + params["b_hh"]
    h = jnp.zeros((B, H), jnp.float32)
    c = jnp.zeros((B, H), jnp.float32)
    for t in range(T):
        g = x[:, t, :] @ w_ih.T + h @ w_hh.T + b
        i = jax.nn.sigmoid(g[:, 0 * H:1 * H])
        f = jax.nn.sigmoid(g[:, 1 * H:2 * H])
        gg = jnp.tanh(g[:, 2 * H:3 * H])
        o = jax.nn.sigmoid(g[:, 3 * H:4 * H])
        c = f * c + i * gg
        h = o * jnp.tanh(c)
    y = h @ params["fc_w"].T + params["fc_b"]
    y = y @ params["fc2_w"].T + params["fc2_b"]
    y = y @ params["fc4_w"].T + params["fc4_b"]
    return y


if __name__ == "__main__":
    key = jax.random.PRNGKey(0)
    k_param, k_x = jax.random.split(key)

    params = init_params(k_param)

    # x as it would enter forward(): (batch=2, seq=8, qubits=4, feats=5);
    # forward's x.view(B, T, -1) flattens the trailing dims to F=20.
    x = jax.random.normal(k_x, (2, 8, NUM_QUBITS_AFTER_TRANSPILE, 5), jnp.float32)

    ref = _reference_forward(x, params)

    # --- f32 path: tight check -------------------------------------------------
    prep_f32 = prepare_params(params, matmul_dtype=jnp.float32)
    out_f32 = jax.block_until_ready(enhanced_rnn_forward(x, prep_f32))
    assert out_f32.shape == (2, N_STATES)
    assert jnp.allclose(out_f32, ref, atol=1e-4, rtol=1e-4), "f32 mismatch vs reference"

    # --- bf16 (default) path: looser check --------------------------------------
    prep_bf16 = prepare_params(params)               # matmul_dtype=bfloat16 default
    out_bf16 = jax.block_until_ready(enhanced_rnn_forward(x, prep_bf16))
    assert out_bf16.shape == (2, N_STATES)
    assert jnp.allclose(out_bf16, ref, atol=5e-2, rtol=5e-2), "bf16 mismatch vs reference"

    print("KERNEL_OK")
</pallas_src>

<mosaic_0001>
module attributes {stable_mosaic.version = 11 : i64} {
  func.func @_lstm_head_kernel(%arg0: memref<64x20xf32, #tpu.memory_space<vmem>>, %arg1: memref<20x512xf32, #tpu.memory_space<vmem>>, %arg2: memref<128x512xf32, #tpu.memory_space<vmem>>, %arg3: memref<1x512xf32, #tpu.memory_space<vmem>>, %arg4: memref<128x128xf32, #tpu.memory_space<vmem>>, %arg5: memref<1x128xf32, #tpu.memory_space<vmem>>, %arg6: memref<8x128xf32, #tpu.memory_space<vmem>>, %arg7: memref<64x512xf32, #tpu.memory_space<vmem>>) attributes {dimension_semantics = [], scalar_prefetch = 0 : i64, scratch_operands = 1 : i64, tpu.core_type = #tpu.core_type<tc>} {
    %c0 = arith.constant 0 : index
    %c0_0 = arith.constant 0 : index
    %0 = vector.load %arg0[%c0, %c0_0] : memref<64x20xf32, #tpu.memory_space<vmem>>, vector<64x20xf32>
    %c0_1 = arith.constant 0 : index
    %c0_2 = arith.constant 0 : index
    %1 = vector.load %arg1[%c0_1, %c0_2] : memref<20x512xf32, #tpu.memory_space<vmem>>, vector<20x512xf32>
    %cst = arith.constant dense<0.000000e+00> : vector<64x512xf32>
    %2 = tpu.matmul %0, %1, %cst {dimension_numbers = #tpu.dot_dimension_numbers<[1], [0], [0], [1], [0, 0, 1, 1], [], []>} : vector<64x20xf32>, vector<20x512xf32>, vector<64x512xf32> -> vector<64x512xf32>
    %c0_3 = arith.constant 0 : index
    %c0_4 = arith.constant 0 : index
    %3 = vector.load %arg3[%c0_3, %c0_4] : memref<1x512xf32, #tpu.memory_space<vmem>>, vector<1x512xf32>
    %4 = vector.broadcast %3 : vector<1x512xf32> to vector<64x512xf32>
    %5 = arith.addf %2, %4 : vector<64x512xf32>
    %c0_5 = arith.constant 0 : index
    %c0_6 = arith.constant 0 : index
    %6 = vector.load %arg7[%c0_5, %c0_6] : memref<64x512xf32, #tpu.memory_space<vmem>>, vector<64x512xf32>
    tpu.vector_store %arg7[%c0_5, %c0_6], %5 {strides = array<i32>} : memref<64x512xf32, #tpu.memory_space<vmem>>, vector<64x512xf32>,
    %c0_7 = arith.constant 0 : index
    %c0_8 = arith.constant 0 : index
    %7 = vector.load %arg2[%c0_7, %c0_8] : memref<128x512xf32, #tpu.memory_space<vmem>>, vector<128x512xf32>
    %cst_9 = arith.constant 0.000000e+00 : f32
    %8 = vector.broadcast %cst_9 : f32 to vector<8x128xf32>
    %cst_10 = arith.constant 0.000000e+00 : f32
    %9 = vector.broadcast %cst_10 : f32 to vector<8x128xf32>
    %c0_11 = arith.constant 0 : index
    %c0_12 = arith.constant 0 : index
    %10 = vector.load %arg7[%c0_11, %c0_12] : memref<64x512xf32, #tpu.memory_space<vmem>>, vector<8x512xf32>
    %cst_13 = arith.constant dense<0.000000e+00> : vector<8x512xf32>
    %11 = tpu.matmul %8, %7, %cst_13 {dimension_numbers = #tpu.dot_dimension_numbers<[1], [0], [0], [1], [0, 0, 1, 1], [], []>} : vector<8x128xf32>, vector<128x512xf32>, vector<8x512xf32> -> vector<8x512xf32>
    %12 = arith.addf %10, %11 : vector<8x512xf32>
    %13 = vector.extract_strided_slice %12 {offsets = [0, 0], sizes = [8, 128], strides = [1, 1]} : vector<8x512xf32> to vector<8x128xf32>
    %14 = arith.negf %13 : vector<8x128xf32>
    %15 = math.exp %14 : vector<8x128xf32>
    %cst_14 = arith.constant 1.000000e+00 : f32
    %16 = vector.broadcast %cst_14 : f32 to vector<8x128xf32>
    %17 = arith.addf %16, %15 : vector<8x128xf32>
    %18 = arith.divf %16, %17 : vector<8x128xf32>
    %19 = vector.extract_strided_slice %12 {offsets = [0, 128], sizes = [8, 128], strides = [1, 1]} : vector<8x512xf32> to vector<8x128xf32>
    %20 = arith.negf %19 : vector<8x128xf32>
    %21 = math.exp %20 : vector<8x128xf32>
    %cst_15 = arith.constant 1.000000e+00 : f32
    %22 = vector.broadcast %cst_15 : f32 to vector<8x128xf32>
    %23 = arith.addf %22, %21 : vector<8x128xf32>
    %24 = arith.divf %22, %23 : vector<8x128xf32>
    %25 = vector.extract_strided_slice %12 {offsets = [0, 256], sizes = [8, 128], strides = [1, 1]} : vector<8x512xf32> to vector<8x128xf32>
    %26 = math.tanh %25 : vector<8x128xf32>
    %27 = vector.extract_strided_slice %12 {offsets = [0, 384], sizes = [8, 128], strides = [1, 1]} : vector<8x512xf32> to vector<8x128xf32>
    %28 = arith.negf %27 : vector<8x128xf32>
    %29 = math.exp %28 : vector<8x128xf32>
    %cst_16 = arith.constant 1.000000e+00 : f32
    %30 = vector.broadcast %cst_16 : f32 to vector<8x128xf32>
    %31 = arith.addf %30, %29 : vector<8x128xf32>
    %32 = arith.divf %30, %31 : vector<8x128xf32>
    %33 = arith.mulf %24, %9 : vector<8x128xf32>
    %34 = arith.mulf %18, %26 : vector<8x128xf32>
    %35 = arith.addf %33, %34 : vector<8x128xf32>
    %36 = math.tanh %35 : vector<8x128xf32>
    %37 = arith.mulf %32, %36 : vector<8x128xf32>
    %c8 = arith.constant 8 : index
    %c0_17 = arith.constant 0 : index
    %38 = vector.load %arg7[%c8, %c0_17] : memref<64x512xf32, #tpu.memory_space<vmem>>, vector<8x512xf32>
    %cst_18 = arith.constant dense<0.000000e+00> : vector<8x512xf32>
    %39 = tpu.matmul %37, %7, %cst_18 {dimension_numbers = #tpu.dot_dimension_numbers<[1], [0], [0], [1], [0, 0, 1, 1], [], []>} : vector<8x128xf32>, vector<128x512xf32>, vector<8x512xf32> -> vector<8x512xf32>
    %40 = arith.addf %38, %39 : vector<8x512xf32>
    %41 = vector.extract_strided_slice %40 {offsets = [0, 0], sizes = [8, 128], strides = [1, 1]} : vector<8x512xf32> to vector<8x128xf32>
    %42 = arith.negf %41 : vector<8x128xf32>
    %43 = math.exp %42 : vector<8x128xf32>
    %cst_19 = arith.constant 1.000000e+00 : f32
    %44 = vector.broadcast %cst_19 : f32 to vector<8x128xf32>
    %45 = arith.addf %44, %43 : vector<8x128xf32>
    %46 = arith.divf %44, %45 : vector<8x128xf32>
    %47 = vector.extract_strided_slice %40 {offsets = [0, 128], sizes = [8, 128], strides = [1, 1]} : vector<8x512xf32> to vector<8x128xf32>
    %48 = arith.negf %47 : vector<8x128xf32>
    %49 = math.exp %48 : vector<8x128xf32>
    %cst_20 = arith.constant 1.000000e+00 : f32
    %50 = vector.broadcast %cst_20 : f32 to vector<8x128xf32>
    %51 = arith.addf %50, %49 : vector<8x128xf32>
    %52 = arith.divf %50, %51 : vector<8x128xf32>
    %53 = vector.extract_strided_slice %40 {offsets = [0, 256], sizes = [8, 128], strides = [1, 1]} : vector<8x512xf32> to vector<8x128xf32>
    %54 = math.tanh %53 : vector<8x128xf32>
    %55 = vector.extract_strided_slice %40 {offsets = [0, 384], sizes = [8, 128], strides = [1, 1]} : vector<8x512xf32> to vector<8x128xf32>
    %56 = arith.negf %55 : vector<8x128xf32>
    %57 = math.exp %56 : vector<8x128xf32>
    %cst_21 = arith.constant 1.000000e+00 : f32
    %58 = vector.broadcast %cst_21 : f32 to vector<8x128xf32>
    %59 = arith.addf %58, %57 : vector<8x128xf32>
    %60 = arith.divf %58, %59 : vector<8x128xf32>
    %61 = arith.mulf %52, %35 : vector<8x128xf32>
    %62 = arith.mulf %46, %54 : vector<8x128xf32>
    %63 = arith.addf %61, %62 : vector<8x128xf32>
    %64 = math.tanh %63 : vector<8x128xf32>
    %65 = arith.mulf %60, %64 : vector<8x128xf32>
    %c16 = arith.constant 16 : index
    %c0_22 = arith.constant 0 : index
    %66 = vector.load %arg7[%c16, %c0_22] : memref<64x512xf32, #tpu.memory_space<vmem>>, vector<8x512xf32>
    %cst_23 = arith.constant dense<0.000000e+00> : vector<8x512xf32>
    %67 = tpu.matmul %65, %7, %cst_23 {dimension_numbers = #tpu.dot_dimension_numbers<[1], [0], [0], [1], [0, 0, 1, 1], [], []>} : vector<8x128xf32>, vector<128x512xf32>, vector<8x512xf32> -> vector<8x512xf32>
    %68 = arith.addf %66, %67 : vector<8x512xf32>
    %69 = vector.extract_strided_slice %68 {offsets = [0, 0], sizes = [8, 128], strides = [1, 1]} : vector<8x512xf32> to vector<8x128xf32>
    %70 = arith.negf %69 : vector<8x128xf32>
    %71 = math.exp %70 : vector<8x128xf32>
    %cst_24 = arith.constant 1.000000e+00 : f32
    %72 = vector.broadcast %cst_24 : f32 to vector<8x128xf32>
    %73 = arith.addf %72, %71 : vector<8x128xf32>
    %74 = arith.divf %72, %73 : vector<8x128xf32>
    %75 = vector.extract_strided_slice %68 {offsets = [0, 128], sizes = [8, 128], strides = [1, 1]} : vector<8x512xf32> to vector<8x128xf32>
    %76 = arith.negf %75 : vector<8x128xf32>
    %77 = math.exp %76 : vector<8x128xf32>
    %cst_25 = arith.constant 1.000000e+00 : f32
    %78 = vector.broadcast %cst_25 : f32 to vector<8x128xf32>
    %79 = arith.addf %78, %77 : vector<8x128xf32>
    %80 = arith.divf %78, %79 : vector<8x128xf32>
    %81 = vector.extract_strided_slice %68 {offsets = [0, 256], sizes = [8, 128], strides = [1, 1]} : vector<8x512xf32> to vector<8x128xf32>
    %82 = math.tanh %81 : vector<8x128xf32>
    %83 = vector.extract_strided_slice %68 {offsets = [0, 384], sizes = [8, 128], strides = [1, 1]} : vector<8x512xf32> to vector<8x128xf32>
    %84 = arith.negf %83 : vector<8x128xf32>
    %85 = math.exp %84 : vector<8x128xf32>
    %cst_26 = arith.constant 1.000000e+00 : f32
    %86 = vector.broadcast %cst_26 : f32 to vector<8x128xf32>
    %87 = arith.addf %86, %85 : vector<8x128xf32>
    %88 = arith.divf %86, %87 : vector<8x128xf32>
    %89 = arith.mulf %80, %63 : vector<8x128xf32>
    %90 = arith.mulf %74, %82 : vector<8x128xf32>
    %91 = arith.addf %89, %90 : vector<8x128xf32>
    %92 = math.tanh %91 : vector<8x128xf32>
    %93 = arith.mulf %88, %92 : vector<8x128xf32>
    %c24 = arith.constant 24 : index
    %c0_27 = arith.constant 0 : index
    %94 = vector.load %arg7[%c24, %c0_27] : memref<64x512xf32, #tpu.memory_space<vmem>>, vector<8x512xf32>
    %cst_28 = arith.constant dense<0.000000e+00> : vector<8x512xf32>
    %95 = tpu.matmul %93, %7, %cst_28 {dimension_numbers = #tpu.dot_dimension_numbers<[1], [0], [0], [1], [0, 0, 1, 1], [], []>} : vector<8x128xf32>, vector<128x512xf32>, vector<8x512xf32> -> vector<8x512xf32>
    %96 = arith.addf %94, %95 : vector<8x512xf32>
    %97 = vector.extract_strided_slice %96 {offsets = [0, 0], sizes = [8, 128], strides = [1, 1]} : vector<8x512xf32> to vector<8x128xf32>
    %98 = arith.negf %97 : vector<8x128xf32>
    %99 = math.exp %98 : vector<8x128xf32>
    %cst_29 = arith.constant 1.000000e+00 : f32
    %100 = vector.broadcast %cst_29 : f32 to vector<8x128xf32>
    %101 = arith.addf %100, %99 : vector<8x128xf32>
    %102 = arith.divf %100, %101 : vector<8x128xf32>
    %103 = vector.extract_strided_slice %96 {offsets = [0, 128], sizes = [8, 128], strides = [1, 1]} : vector<8x512xf32> to vector<8x128xf32>
    %104 = arith.negf %103 : vector<8x128xf32>
    %105 = math.exp %104 : vector<8x128xf32>
    %cst_30 = arith.constant 1.000000e+00 : f32
    %106 = vector.broadcast %cst_30 : f32 to vector<8x128xf32>
    %107 = arith.addf %106, %105 : vector<8x128xf32>
    %108 = arith.divf %106, %107 : vector<8x128xf32>
    %109 = vector.extract_strided_slice %96 {offsets = [0, 256], sizes = [8, 128], strides = [1, 1]} : vector<8x512xf32> to vector<8x128xf32>
    %110 = math.tanh %109 : vector<8x128xf32>
    %111 = vector.extract_strided_slice %96 {offsets = [0, 384], sizes = [8, 128], strides = [1, 1]} : vector<8x512xf32> to vector<8x128xf32>
    %112 = arith.negf %111 : vector<8x128xf32>
    %113 = math.exp %112 : vector<8x128xf32>
    %cst_31 = arith.constant 1.000000e+00 : f32
    %114 = vector.broadcast %cst_31 : f32 to vector<8x128xf32>
    %115 = arith.addf %114, %113 : vector<8x128xf32>
    %116 = arith.divf %114, %115 : vector<8x128xf32>
    %117 = arith.mulf %108, %91 : vector<8x128xf32>
    %118 = arith.mulf %102, %110 : vector<8x128xf32>
    %119 = arith.addf %117, %118 : vector<8x128xf32>
    %120 = math.tanh %119 : vector<8x128xf32>
    %121 = arith.mulf %116, %120 : vector<8x128xf32>
    %c32 = arith.constant 32 : index
    %c0_32 = arith.constant 0 : index
    %122 = vector.load %arg7[%c32, %c0_32] : memref<64x512xf32, #tpu.memory_space<vmem>>, vector<8x512xf32>
    %cst_33 = arith.constant dense<0.000000e+00> : vector<8x512xf32>
    %123 = tpu.matmul %121, %7, %cst_33 {dimension_numbers = #tpu.dot_dimension_numbers<[1], [0], [0], [1], [0, 0, 1, 1], [], []>} : vector<8x128xf32>, vector<128x512xf32>, vector<8x512xf32> -> vector<8x512xf32>
    %124 = arith.addf %122, %123 : vector<8x512xf32>
    %125 = vector.extract_strided_slice %124 {offsets = [0, 0], sizes = [8, 128], strides = [1, 1]} : vector<8x512xf32> to vector<8x128xf32>
    %126 = arith.negf %125 : vector<8x128xf32>
    %127 = math.exp %126 : vector<8x128xf32>
    %cst_34 = arith.constant 1.000000e+00 : f32
    %128 = vector.broadcast %cst_34 : f32 to vector<8x128xf32>
    %129 = arith.addf %128, %127 : vector<8x128xf32>
    %130 = arith.divf %128, %129 : vector<8x128xf32>
    %131 = vector.extract_strided_slice %124 {offsets = [0, 128], sizes = [8, 128], strides = [1, 1]} : vector<8x512xf32> to vector<8x128xf32>
    %132 = arith.negf %131 : vector<8x128xf32>
    %133 = math.exp %132 : vector<8x128xf32>
    %cst_35 = arith.constant 1.000000e+00 : f32
    %134 = vector.broadcast %cst_35 : f32 to vector<8x128xf32>
    %135 = arith.addf %134, %133 : vector<8x128xf32>
    %136 = arith.divf %134, %135 : vector<8x128xf32>
    %137 = vector.extract_strided_slice %124 {offsets = [0, 256], sizes = [8, 128], strides = [1, 1]} : vector<8x512xf32> to vector<8x128xf32>
    %138 = math.tanh %137 : vector<8x128xf32>
    %139 = vector.extract_strided_slice %124 {offsets = [0, 384], sizes = [8, 128], strides = [1, 1]} : vector<8x512xf32> to vector<8x128xf32>
    %140 = arith.negf %139 : vector<8x128xf32>
    %141 = math.exp %140 : vector<8x128xf32>
    %cst_36 = arith.constant 1.000000e+00 : f32
    %142 = vector.broadcast %cst_36 : f32 to vector<8x128xf32>
    %143 = arith.addf %142, %141 : vector<8x128xf32>
    %144 = arith.divf %142, %143 : vector<8x128xf32>
    %145 = arith.mulf %136, %119 : vector<8x128xf32>
    %146 = arith.mulf %130, %138 : vector<8x128xf32>
    %147 = arith.addf %145, %146 : vector<8x128xf32>
    %148 = math.tanh %147 : vector<8x128xf32>
    %149 = arith.mulf %144, %148 : vector<8x128xf32>
    %c40 = arith.constant 40 : index
    %c0_37 = arith.constant 0 : index
    %150 = vector.load %arg7[%c40, %c0_37] : memref<64x512xf32, #tpu.memory_space<vmem>>, vector<8x512xf32>
    %cst_38 = arith.constant dense<0.000000e+00> : vector<8x512xf32>
    %151 = tpu.matmul %149, %7, %cst_38 {dimension_numbers = #tpu.dot_dimension_numbers<[1], [0], [0], [1], [0, 0, 1, 1], [], []>} : vector<8x128xf32>, vector<128x512xf32>, vector<8x512xf32> -> vector<8x512xf32>
    %152 = arith.addf %150, %151 : vector<8x512xf32>
    %153 = vector.extract_strided_slice %152 {offsets = [0, 0], sizes = [8, 128], strides = [1, 1]} : vector<8x512xf32> to vector<8x128xf32>
    %154 = arith.negf %153 : vector<8x128xf32>
    %155 = math.exp %154 : vector<8x128xf32>
    %cst_39 = arith.constant 1.000000e+00 : f32
    %156 = vector.broadcast %cst_39 : f32 to vector<8x128xf32>
    %157 = arith.addf %156, %155 : vector<8x128xf32>
    %158 = arith.divf %156, %157 : vector<8x128xf32>
    %159 = vector.extract_strided_slice %152 {offsets = [0, 128], sizes = [8, 128], strides = [1, 1]} : vector<8x512xf32> to vector<8x128xf32>
    %160 = arith.negf %159 : vector<8x128xf32>
    %161 = math.exp %160 : vector<8x128xf32>
    %cst_40 = arith.constant 1.000000e+00 : f32
    %162 = vector.broadcast %cst_40 : f32 to vector<8x128xf32>
    %163 = arith.addf %162, %161 : vector<8x128xf32>
    %164 = arith.divf %162, %163 : vector<8x128xf32>
    %165 = vector.extract_strided_slice %152 {offsets = [0, 256], sizes = [8, 128], strides = [1, 1]} : vector<8x512xf32> to vector<8x128xf32>
    %166 = math.tanh %165 : vector<8x128xf32>
    %167 = vector.extract_strided_slice %152 {offsets = [0, 384], sizes = [8, 128], strides = [1, 1]} : vector<8x512xf32> to vector<8x128xf32>
    %168 = arith.negf %167 : vector<8x128xf32>
    %169 = math.exp %168 : vector<8x128xf32>
    %cst_41 = arith.constant 1.000000e+00 : f32
    %170 = vector.broadcast %cst_41 : f32 to vector<8x128xf32>
    %171 = arith.addf %170, %169 : vector<8x128xf32>
    %172 = arith.divf %170, %171 : vector<8x128xf32>
    %173 = arith.mulf %164, %147 : vector<8x128xf32>
    %174 = arith.mulf %158, %166 : vector<8x128xf32>
    %175 = arith.addf %173, %174 : vector<8x128xf32>
    %176 = math.tanh %175 : vector<8x128xf32>
    %177 = arith.mulf %172, %176 : vector<8x128xf32>
    %c48 = arith.constant 48 : index
    %c0_42 = arith.constant 0 : index
    %178 = vector.load %arg7[%c48, %c0_42] : memref<64x512xf32, #tpu.memory_space<vmem>>, vector<8x512xf32>
    %cst_43 = arith.constant dense<0.000000e+00> : vector<8x512xf32>
    %179 = tpu.matmul %177, %7, %cst_43 {dimension_numbers = #tpu.dot_dimension_numbers<[1], [0], [0], [1], [0, 0, 1, 1], [], []>} : vector<8x128xf32>, vector<128x512xf32>, vector<8x512xf32> -> vector<8x512xf32>
    %180 = arith.addf %178, %179 : vector<8x512xf32>
    %181 = vector.extract_strided_slice %180 {offsets = [0, 0], sizes = [8, 128], strides = [1, 1]} : vector<8x512xf32> to vector<8x128xf32>
    %182 = arith.negf %181 : vector<8x128xf32>
    %183 = math.exp %182 : vector<8x128xf32>
    %cst_44 = arith.constant 1.000000e+00 : f32
    %184 = vector.broadcast %cst_44 : f32 to vector<8x128xf32>
    %185 = arith.addf %184, %183 : vector<8x128xf32>
    %186 = arith.divf %184, %185 : vector<8x128xf32>
    %187 = vector.extract_strided_slice %180 {offsets = [0, 128], sizes = [8, 128], strides = [1, 1]} : vector<8x512xf32> to vector<8x128xf32>
    %188 = arith.negf %187 : vector<8x128xf32>
    %189 = math.exp %188 : vector<8x128xf32>
    %cst_45 = arith.constant 1.000000e+00 : f32
    %190 = vector.broadcast %cst_45 : f32 to vector<8x128xf32>
    %191 = arith.addf %190, %189 : vector<8x128xf32>
    %192 = arith.divf %190, %191 : vector<8x128xf32>
    %193 = vector.extract_strided_slice %180 {offsets = [0, 256], sizes = [8, 128], strides = [1, 1]} : vector<8x512xf32> to vector<8x128xf32>
    %194 = math.tanh %193 : vector<8x128xf32>
    %195 = vector.extract_strided_slice %180 {offsets = [0, 384], sizes = [8, 128], strides = [1, 1]} : vector<8x512xf32> to vector<8x128xf32>
    %196 = arith.negf %195 : vector<8x128xf32>
    %197 = math.exp %196 : vector<8x128xf32>
    %cst_46 = arith.constant 1.000000e+00 : f32
    %198 = vector.broadcast %cst_46 : f32 to vector<8x128xf32>
    %199 = arith.addf %198, %197 : vector<8x128xf32>
    %200 = arith.divf %198, %199 : vector<8x128xf32>
    %201 = arith.mulf %192, %175 : vector<8x128xf32>
    %202 = arith.mulf %186, %194 : vector<8x128xf32>
    %203 = arith.addf %201, %202 : vector<8x128xf32>
    %204 = math.tanh %203 : vector<8x128xf32>
    %205 = arith.mulf %200, %204 : vector<8x128xf32>
    %c56 = arith.constant 56 : index
    %c0_47 = arith.constant 0 : index
    %206 = vector.load %arg7[%c56, %c0_47] : memref<64x512xf32, #tpu.memory_space<vmem>>, vector<8x512xf32>
    %cst_48 = arith.constant dense<0.000000e+00> : vector<8x512xf32>
    %207 = tpu.matmul %205, %7, %cst_48 {dimension_numbers = #tpu.dot_dimension_numbers<[1], [0], [0], [1], [0, 0, 1, 1], [], []>} : vector<8x128xf32>, vector<128x512xf32>, vector<8x512xf32> -> vector<8x512xf32>
    %208 = arith.addf %206, %207 : vector<8x512xf32>
    %209 = vector.extract_strided_slice %208 {offsets = [0, 0], sizes = [8, 128], strides = [1, 1]} : vector<8x512xf32> to vector<8x128xf32>
    %210 = arith.negf %209 : vector<8x128xf32>
    %211 = math.exp %210 : vector<8x128xf32>
    %cst_49 = arith.constant 1.000000e+00 : f32
    %212 = vector.broadcast %cst_49 : f32 to vector<8x128xf32>
    %213 = arith.addf %212, %211 : vector<8x128xf32>
    %214 = arith.divf %212, %213 : vector<8x128xf32>
    %215 = vector.extract_strided_slice %208 {offsets = [0, 128], sizes = [8, 128], strides = [1, 1]} : vector<8x512xf32> to vector<8x128xf32>
    %216 = arith.negf %215 : vector<8x128xf32>
    %217 = math.exp %216 : vector<8x128xf32>
    %cst_50 = arith.constant 1.000000e+00 : f32
    %218 = vector.broadcast %cst_50 : f32 to vector<8x128xf32>
    %219 = arith.addf %218, %217 : vector<8x128xf32>
    %220 = arith.divf %218, %219 : vector<8x128xf32>
    %221 = vector.extract_strided_slice %208 {offsets = [0, 256], sizes = [8, 128], strides = [1, 1]} : vector<8x512xf32> to vector<8x128xf32>
    %222 = math.tanh %221 : vector<8x128xf32>
    %223 = vector.extract_strided_slice %208 {offsets = [0, 384], sizes = [8, 128], strides = [1, 1]} : vector<8x512xf32> to vector<8x128xf32>
    %224 = arith.negf %223 : vector<8x128xf32>
    %225 = math.exp %224 : vector<8x128xf32>
    %cst_51 = arith.constant 1.000000e+00 : f32
    %226 = vector.broadcast %cst_51 : f32 to vector<8x128xf32>
    %227 = arith.addf %226, %225 : vector<8x128xf32>
    %228 = arith.divf %226, %227 : vector<8x128xf32>
    %229 = arith.mulf %220, %203 : vector<8x128xf32>
    %230 = arith.mulf %214, %222 : vector<8x128xf32>
    %231 = arith.addf %229, %230 : vector<8x128xf32>
    %232 = math.tanh %231 : vector<8x128xf32>
    %233 = arith.mulf %228, %232 : vector<8x128xf32>
    %c0_52 = arith.constant 0 : index
    %c0_53 = arith.constant 0 : index
    %234 = vector.load %arg4[%c0_52, %c0_53] : memref<128x128xf32, #tpu.memory_space<vmem>>, vector<128x128xf32>
    %cst_54 = arith.constant dense<0.000000e+00> : vector<8x128xf32>
    %235 = tpu.matmul %233, %234, %cst_54 {dimension_numbers = #tpu.dot_dimension_numbers<[1], [0], [0], [1], [0, 0, 1, 1], [], []>} : vector<8x128xf32>, vector<128x128xf32>, vector<8x128xf32> -> vector<8x128xf32>
    %c0_55 = arith.constant 0 : index
    %c0_56 = arith.constant 0 : index
    %236 = vector.load %arg5[%c0_55, %c0_56] : memref<1x128xf32, #tpu.memory_space<vmem>>, vector<1x128xf32>
    %237 = vector.broadcast %236 : vector<1x128xf32> to vector<8x128xf32>
    %238 = arith.addf %235, %237 : vector<8x128xf32>
    %c0_57 = arith.constant 0 : index
    %c0_58 = arith.constant 0 : index
    %239 = vector.load %arg6[%c0_57, %c0_58] : memref<8x128xf32, #tpu.memory_space<vmem>>, vector<8x128xf32>
    tpu.vector_store %arg6[%c0_57, %c0_58], %238 {strides = array<i32>} : memref<8x128xf32, #tpu.memory_space<vmem>>, vector<8x128xf32>,
    return
  }
}

</mosaic_0001>

<llo_original>
// kernel: _forward_impl.1
$region0: #{_forward_impl.1}
  #allocation0 [shape = 'u32[]', space=smem, size = 0x4, offset = 0x4, fixed_abs, tag = 'smem constant byte address 0x4 - core index']
  #allocation1 [shape = 'u32[72,128]{1,0:T(1,128)}', space=vmem, size = 0x9000, scoped, tag = 'internal scratch']
  #allocation2 [shape = 'f32[64,512]{1,0:T(8,128)}', space=vmem, size = 0x20000, scoped, tag = 'scratch operand']
  %s0 = inlined_call_operand.vmem [shape: f32[64,20], index: 0, kind: input, shape index: {}]
  %s1 = inlined_call_operand.hbm [shape: f32[20,512], index: 1, kind: input, shape index: {}]
  %s2 = inlined_call_operand.hbm [shape: f32[128,512], index: 2, kind: input, shape index: {}]
  %s3 = inlined_call_operand.vmem [shape: f32[1,512], index: 3, kind: input, shape index: {}]
  %s4 = inlined_call_operand.vmem [shape: f32[128,128], index: 4, kind: input, shape index: {}]
  %s5 = inlined_call_operand.vmem [shape: f32[1,128], index: 5, kind: input, shape index: {}]
  %s6 = inlined_call_operand.vmem [shape: f32[8,128], index: 6, kind: output, shape index: {}]
  %s7 = sld [smem:[#allocation0]]
  $region42: #{_forward_impl.1} parent=0
    _
  %s9 = ssub.s32 1, %s7
  %s10 = scalar_select 0, %s9, %s7
  $region1: #{_forward_impl.1} parent=0
    #allocation3 [shape = 'u8[49152]{0}', space=vmem, size = 0xc000, scoped, tag = 'input window, operand 1, single buffered']
    #allocation4 [shape = 's32[1]{0}', space=sflag, size = 0x4, scoped, tag = 'scoped memory for _forward_impl.1']
    #allocation5 [shape = 'u8[262144]{0}', space=vmem, size = 0x40000, scoped, tag = 'input window, operand 2, single buffered']
    #allocation6 [shape = 's32[1]{0}', space=sflag, size = 0x4, scoped, tag = 'scoped memory for _forward_impl.1']
    %11 = vsyncpa [#allocation4], 0
    %12 = vsyncpa [#allocation6], 0
    // Predicated region
    $region2: #{_forward_impl.1} parent=1 // pred_check
      _
    $region3: #{_forward_impl.1} parent=1 // pred_check_branch
      %14 = sbr.rel (0) target = $region5
    $region4: #{_forward_impl.1} parent=1 // pred_region
      _
    $region5: #{_forward_impl.1} parent=1 // pred_fallthru
      _
    // Predicated region
    $region6: #{_forward_impl.1} parent=1 // pred_check
      _
    $region7: #{_forward_impl.1} parent=1 // pred_check_branch
      %16 = sbr.rel (0) target = $region9
    $region8: #{_forward_impl.1} parent=1 // pred_region
      %18 = vsyncadd [#allocation4], 0
      %s19 = sshll.u32 %s1, 4
      %s20 = int_to_ptr.hbm [resolvable:$true] %s19
      %s21 = sshll.u32 [#allocation3], 4
      %s22 = int_to_ptr.vmem [resolvable:$true] %s21
      %27 = dma.hbm_to_vmem [thread:$0]  %s20, 1536, %s22, [#allocation4], 512, 512, 32
    $region9: #{_forward_impl.1} parent=1 // pred_fallthru
      _
    // Predicated region
    $region10: #{_forward_impl.1} parent=1 // pred_check
      _
    $region11: #{_forward_impl.1} parent=1 // pred_check_branch
      %29 = sbr.rel (0) target = $region13
    $region12: #{_forward_impl.1} parent=1 // pred_region
      %31 = vsyncadd [#allocation6], 0
      %s32 = sshll.u32 %s2, 4
      %s33 = int_to_ptr.hbm [resolvable:$true] %s32
      %s34 = sshll.u32 [#allocation5], 4
      %s35 = int_to_ptr.vmem [resolvable:$true] %s34
      %40 = dma.hbm_to_vmem [thread:$0]  %s33, 8192, %s35, [#allocation6], 512, 512, 32
    $region13: #{_forward_impl.1} parent=1 // pred_fallthru
      _
    // Predicated region
    $region14: #{_forward_impl.1} parent=1 // pred_check
      _
    $region15: #{_forward_impl.1} parent=1 // pred_check_branch
      %42 = sbr.rel (0) target = $region17
    $region16: #{_forward_impl.1} parent=1 // pred_region
      _
    $region17: #{_forward_impl.1} parent=1 // pred_fallthru
      _
    // Predicated region
    $region18: #{_forward_impl.1} parent=1 // pred_check
      _
    $region19: #{_forward_impl.1} parent=1 // pred_check_branch
      %44 = sbr.rel (0) target = $region21
    $region20: #{_forward_impl.1} parent=1 // pred_region
      _
    $region21: #{_forward_impl.1} parent=1 // pred_fallthru
      _
    // Predicated region
    $region22: #{_forward_impl.1} parent=1 // pred_check
      _
    $region23: #{_forward_impl.1} parent=1 // pred_check_branch
      %46 = sbr.rel (0) target = $region25
    $region24: #{_forward_impl.1} parent=1 // pred_region
      _
    $region25: #{_forward_impl.1} parent=1 // pred_fallthru
      _
    // Predicated region
    $region26: #{_forward_impl.1} parent=1 // pred_check
      _
    $region27: #{_forward_impl.1} parent=1 // pred_check_branch
      %48 = sbr.rel (0) target = $region29
    $region28: #{_forward_impl.1} parent=1 // pred_region
      %50 = dma.done [#allocation4], 1536
    $region29: #{_forward_impl.1} parent=1 // pred_fallthru
      _
    // Predicated region
    $region30: #{_forward_impl.1} parent=1 // pred_check
      _
    $region31: #{_forward_impl.1} parent=1 // pred_check_branch
      %52 = sbr.rel (0) target = $region33
    $region32: #{_forward_impl.1} parent=1 // pred_region
      %54 = dma.done [#allocation6], 8192
    $region33: #{_forward_impl.1} parent=1 // pred_fallthru
      _
    %v55 = vld [vmem:[%s0] sm:$0xff]
    %v56 = vld [vmem:[%s0 + $0x8] sm:$0xff]
    %v57 = vld [vmem:[%s0 + $0x10] sm:$0xff]
    %v58 = vld [vmem:[%s0 + $0x18] sm:$0xff]
    %v59 = vld [vmem:[%s0 + $0x20] sm:$0xff]
    %v60 = vld [vmem:[%s0 + $0x28] sm:$0xff]
    %v61 = vld [vmem:[%s0 + $0x30] sm:$0xff]
    %v62 = vld [vmem:[%s0 + $0x38] sm:$0xff]
    %v63 = vld [vmem:[#allocation3] sm:$0xff]
    %v64 = vld [vmem:[#allocation3 + $0x8] sm:$0xff]
    %v65 = vld [vmem:[#allocation3 + $0x10] sm:$0xff]
    %v66 = vld [vmem:[#allocation3 + $0x18] sm:$0xff]
    %v67 = vld [vmem:[#allocation3 + $0x20] sm:$0xff]
    %v68 = vld [vmem:[#allocation3 + $0x28] sm:$0xff]
    %v69 = vld [vmem:[#allocation3 + $0x30] sm:$0xff]
    %v70 = vld [vmem:[#allocation3 + $0x38] sm:$0xff]
    %v71 = vld [vmem:[#allocation3 + $0x40] sm:$0xf]
    %v72 = vld [vmem:[#allocation3 + $0x48] sm:$0xf]
    %v73 = vld [vmem:[#allocation3 + $0x50] sm:$0xf]
    %v74 = vld [vmem:[#allocation3 + $0x58] sm:$0xf]
    %v75 = vld [vmem:[%s3] sm:$0xf]
    %v77 = vperm.slane %v75, 0
    %v78 = vperm.slane %v75, 1
    %v79 = vperm.slane %v75, 2
    %v80 = vperm.slane %v75, 3
    %vm85 = vcmask 162816
    %v87 = vsel %vm85, %v55, 0
    %v90 = vsel %vm85, %v56, 0
    %v93 = vsel %vm85, %v57, 0
    %v96 = vsel %vm85, %v58, 0
    %v99 = vsel %vm85, %v59, 0
    %v102 = vsel %vm85, %v60, 0
    %v105 = vsel %vm85, %v61, 0
    %v108 = vsel %vm85, %v62, 0
    %vm110 = vcmask 1043456
    %v112 = vsel %vm110, %v71, 0
    %v115 = vsel %vm110, %v72, 0
    %v118 = vsel %vm110, %v73, 0
    %v121 = vsel %vm110, %v74, 0
    %123 = vmatpush.msra.mxu0 0.0
    %124 = vmatpush.msra.mxu0 0.0
    %125 = vmatpush.msra.mxu0 0.0
    %126 = vmatpush.msra.mxu0 0.0
    %127 = vmatpush.msra.mxu0 0.0
    %128 = vmatpush.msra.mxu0 0.0
    %129 = vmatpush.msra.mxu0 0.0
    %130 = vmatpush.msra.mxu0 0.0
    %131 = vmatpush.msra.mxu0 0.0
    %132 = vmatpush.msra.mxu0 0.0
    %133 = vmatpush.msra.mxu0 0.0
    %134 = vmatpush.msra.mxu0 0.0
    %135 = vmatpush.msra.mxu0 0.0
    %136 = vmatpush.msra.mxu0 %v112
    %137 = vmatpush.msra.mxu0 %v67
    %138 = vmatpush.msra.mxu0 %v63
    %139 = vmatmul.f32.gmra.mxu0 %v87
    %v140 = vpop.f32.mrf.mxu0
    %v141 = vadd.f32 %v77, %v140
    %142 = vmatmul.f32.gmra.mxu0 %v90
    %v143 = vpop.f32.mrf.mxu0
    %v144 = vadd.f32 %v77, %v143
    %145 = vmatmul.f32.gmra.mxu0 %v93
    %v146 = vpop.f32.mrf.mxu0
    %v147 = vadd.f32 %v77, %v146
    %148 = vmatmul.f32.gmra.mxu0 %v96
    %v149 = vpop.f32.mrf.mxu0
    %v150 = vadd.f32 %v77, %v149
    %151 = vmatmul.f32.gmra.mxu0 %v99
    %v152 = vpop.f32.mrf.mxu0
    %v153 = vadd.f32 %v77, %v152
    %154 = vmatmul.f32.gmra.mxu0 %v102
    %v155 = vpop.f32.mrf.mxu0
    %v156 = vadd.f32 %v77, %v155
    %157 = vmatmul.f32.gmra.mxu0 %v105
    %v158 = vpop.f32.mrf.mxu0
    %v159 = vadd.f32 %v77, %v158
    %160 = vmatmul.f32.gmra.mxu0 %v108
    %v161 = vpop.f32.mrf.mxu0
    %v162 = vadd.f32 %v77, %v161
    %163 = vdwg.mxu0
    %164 = vmatpush.msra.mxu0 0.0
    %165 = vmatpush.msra.mxu0 0.0
    %166 = vmatpush.msra.mxu0 0.0
    %167 = vmatpush.msra.mxu0 0.0
    %168 = vmatpush.msra.mxu0 0.0
    %169 = vmatpush.msra.mxu0 0.0
    %170 = vmatpush.msra.mxu0 0.0
    %171 = vmatpush.msra.mxu0 0.0
    %172 = vmatpush.msra.mxu0 0.0
    %173 = vmatpush.msra.mxu0 0.0
    %174 = vmatpush.msra.mxu0 0.0
    %175 = vmatpush.msra.mxu0 0.0
    %176 = vmatpush.msra.mxu0 0.0
    %177 = vmatpush.msra.mxu0 %v115
    %178 = vmatpush.msra.mxu0 %v68
    %179 = vmatpush.msra.mxu0 %v64
    %180 = vmatmul.f32.gmra.mxu0 %v87
    %v181 = vpop.f32.mrf.mxu0
    %v182 = vadd.f32 %v78, %v181
    %183 = vmatmul.f32.gmra.mxu0 %v90
    %v184 = vpop.f32.mrf.mxu0
    %v185 = vadd.f32 %v78, %v184
    %186 = vmatmul.f32.gmra.mxu0 %v93
    %v187 = vpop.f32.mrf.mxu0
    %v188 = vadd.f32 %v78, %v187
    %189 = vmatmul.f32.gmra.mxu0 %v96
    %v190 = vpop.f32.mrf.mxu0
    %v191 = vadd.f32 %v78, %v190
    %192 = vmatmul.f32.gmra.mxu0 %v99
    %v193 = vpop.f32.mrf.mxu0
    %v194 = vadd.f32 %v78, %v193
    %195 = vmatmul.f32.gmra.mxu0 %v102
    %v196 = vpop.f32.mrf.mxu0
    %v197 = vadd.f32 %v78, %v196
    %198 = vmatmul.f32.gmra.mxu0 %v105
    %v199 = vpop.f32.mrf.mxu0
    %v200 = vadd.f32 %v78, %v199
    %201 = vmatmul.f32.gmra.mxu0 %v108
    %v202 = vpop.f32.mrf.mxu0
    %v203 = vadd.f32 %v78, %v202
    %204 = vdwg.mxu0
    %205 = vmatpush.msra.mxu0 0.0
    %206 = vmatpush.msra.mxu0 0.0
    %207 = vmatpush.msra.mxu0 0.0
    %208 = vmatpush.msra.mxu0 0.0
    %209 = vmatpush.msra.mxu0 0.0
    %210 = vmatpush.msra.mxu0 0.0
    %211 = vmatpush.msra.mxu0 0.0
    %212 = vmatpush.msra.mxu0 0.0
    %213 = vmatpush.msra.mxu0 0.0
    %214 = vmatpush.msra.mxu0 0.0
    %215 = vmatpush.msra.mxu0 0.0
    %216 = vmatpush.msra.mxu0 0.0
    %217 = vmatpush.msra.mxu0 0.0
    %218 = vmatpush.msra.mxu0 %v118
    %219 = vmatpush.msra.mxu0 %v69
    %220 = vmatpush.msra.mxu0 %v65
    %221 = vmatmul.f32.gmra.mxu0 %v87
    %v222 = vpop.f32.mrf.mxu0
    %v223 = vadd.f32 %v79, %v222
    %224 = vmatmul.f32.gmra.mxu0 %v90
    %v225 = vpop.f32.mrf.mxu0
    %v226 = vadd.f32 %v79, %v225
    %227 = vmatmul.f32.gmra.mxu0 %v93
    %v228 = vpop.f32.mrf.mxu0
    %v229 = vadd.f32 %v79, %v228
    %230 = vmatmul.f32.gmra.mxu0 %v96
    %v231 = vpop.f32.mrf.mxu0
    %v232 = vadd.f32 %v79, %v231
    %233 = vmatmul.f32.gmra.mxu0 %v99
    %v234 = vpop.f32.mrf.mxu0
    %v235 = vadd.f32 %v79, %v234
    %236 = vmatmul.f32.gmra.mxu0 %v102
    %v237 = vpop.f32.mrf.mxu0
    %v238 = vadd.f32 %v79, %v237
    %239 = vmatmul.f32.gmra.mxu0 %v105
    %v240 = vpop.f32.mrf.mxu0
    %v241 = vadd.f32 %v79, %v240
    %242 = vmatmul.f32.gmra.mxu0 %v108
    %v243 = vpop.f32.mrf.mxu0
    %v244 = vadd.f32 %v79, %v243
    %245 = vdwg.mxu0
    %246 = vmatpush.msra.mxu0 0.0
    %247 = vmatpush.msra.mxu0 0.0
    %248 = vmatpush.msra.mxu0 0.0
    %249 = vmatpush.msra.mxu0 0.0
    %250 = vmatpush.msra.mxu0 0.0
    %251 = vmatpush.msra.mxu0 0.0
    %252 = vmatpush.msra.mxu0 0.0
    %253 = vmatpush.msra.mxu0 0.0
    %254 = vmatpush.msra.mxu0 0.0
    %255 = vmatpush.msra.mxu0 0.0
    %256 = vmatpush.msra.mxu0 0.0
    %257 = vmatpush.msra.mxu0 0.0
    %258 = vmatpush.msra.mxu0 0.0
    %259 = vmatpush.msra.mxu0 %v121
    %260 = vmatpush.msra.mxu0 %v70
    %261 = vmatpush.msra.mxu0 %v66
    %262 = vmatmul.f32.gmra.mxu0 %v87
    %v263 = vpop.f32.mrf.mxu0
    %v264 = vadd.f32 %v80, %v263
    %265 = vmatmul.f32.gmra.mxu0 %v90
    %v266 = vpop.f32.mrf.mxu0
    %v267 = vadd.f32 %v80, %v266
    %268 = vmatmul.f32.gmra.mxu0 %v93
    %v269 = vpop.f32.mrf.mxu0
    %v270 = vadd.f32 %v80, %v269
    %271 = vmatmul.f32.gmra.mxu0 %v96
    %v272 = vpop.f32.mrf.mxu0
    %v273 = vadd.f32 %v80, %v272
    %274 = vmatmul.f32.gmra.mxu0 %v99
    %v275 = vpop.f32.mrf.mxu0
    %v276 = vadd.f32 %v80, %v275
    %277 = vmatmul.f32.gmra.mxu0 %v102
    %v278 = vpop.f32.mrf.mxu0
    %v279 = vadd.f32 %v80, %v278
    %280 = vmatmul.f32.gmra.mxu0 %v105
    %v281 = vpop.f32.mrf.mxu0
    %v282 = vadd.f32 %v80, %v281
    %283 = vmatmul.f32.gmra.mxu0 %v108
    %v284 = vpop.f32.mrf.mxu0
    %v285 = vadd.f32 %v80, %v284
    %286 = vdwg.mxu0
    %287 = vst [vmem:[#allocation2] sm:$0xff] %v141
    %288 = vst [vmem:[#allocation2 + $0x8] sm:$0xff] %v182
    %289 = vst [vmem:[#allocation2 + $0x10] sm:$0xff] %v223
    %290 = vst [vmem:[#allocation2 + $0x18] sm:$0xff] %v264
    %291 = vst [vmem:[#allocation2 + $0x20] sm:$0xff] %v144
    %292 = vst [vmem:[#allocation2 + $0x28] sm:$0xff] %v185
    %293 = vst [vmem:[#allocation2 + $0x30] sm:$0xff] %v226
    %294 = vst [vmem:[#allocation2 + $0x38] sm:$0xff] %v267
    %295 = vst [vmem:[#allocation2 + $0x40] sm:$0xff] %v147
    %296 = vst [vmem:[#allocation2 + $0x48] sm:$0xff] %v188
    %297 = vst [vmem:[#allocation2 + $0x50] sm:$0xff] %v229
    %298 = vst [vmem:[#allocation2 + $0x58] sm:$0xff] %v270
    %299 = vst [vmem:[#allocation2 + $0x60] sm:$0xff] %v150
    %300 = vst [vmem:[#allocation2 + $0x68] sm:$0xff] %v191
    %301 = vst [vmem:[#allocation2 + $0x70] sm:$0xff] %v232
    %302 = vst [vmem:[#allocation2 + $0x78] sm:$0xff] %v273
    %303 = vst [vmem:[#allocation2 + $0x80] sm:$0xff] %v153
    %304 = vst [vmem:[#allocation2 + $0x88] sm:$0xff] %v194
    %305 = vst [vmem:[#allocation2 + $0x90] sm:$0xff] %v235
    %306 = vst [vmem:[#allocation2 + $0x98] sm:$0xff] %v276
    %307 = vst [vmem:[#allocation2 + $0xa0] sm:$0xff] %v156
    %308 = vst [vmem:[#allocation2 + $0xa8] sm:$0xff] %v197
    %309 = vst [vmem:[#allocation2 + $0xb0] sm:$0xff] %v238
    %310 = vst [vmem:[#allocation2 + $0xb8] sm:$0xff] %v279
    %311 = vst [vmem:[#allocation2 + $0xc0] sm:$0xff] %v159
    %312 = vst [vmem:[#allocation2 + $0xc8] sm:$0xff] %v200
    %313 = vst [vmem:[#allocation2 + $0xd0] sm:$0xff] %v241
    %314 = vst [vmem:[#allocation2 + $0xd8] sm:$0xff] %v282
    %315 = vst [vmem:[#allocation2 + $0xe0] sm:$0xff] %v162
    %316 = vst [vmem:[#allocation2 + $0xe8] sm:$0xff] %v203
    %317 = vst [vmem:[#allocation2 + $0xf0] sm:$0xff] %v244
    %318 = vst [vmem:[#allocation2 + $0xf8] sm:$0xff] %v285
    %v319 = vld [vmem:[#allocation5] sm:$0xff]
    %v320 = vld [vmem:[#allocation5 + $0x8] sm:$0xff]
    %v321 = vld [vmem:[#allocation5 + $0x10] sm:$0xff]
    %v322 = vld [vmem:[#allocation5 + $0x18] sm:$0xff]
    %v323 = vld [vmem:[#allocation5 + $0x20] sm:$0xff]
    %v324 = vld [vmem:[#allocation5 + $0x28] sm:$0xff]
    %v325 = vld [vmem:[#allocation5 + $0x30] sm:$0xff]
    %v326 = vld [vmem:[#allocation5 + $0x38] sm:$0xff]
    %v327 = vld [vmem:[#allocation5 + $0x40] sm:$0xff]
    %v328 = vld [vmem:[#allocation5 + $0x48] sm:$0xff]
    %v329 = vld [vmem:[#allocation5 + $0x50] sm:$0xff]
    %v330 = vld [vmem:[#allocation5 + $0x58] sm:$0xff]
    %v331 = vld [vmem:[#allocation5 + $0x60] sm:$0xff]
    %v332 = vld [vmem:[#allocation5 + $0x68] sm:$0xff]
    %v333 = vld [vmem:[#allocation5 + $0x70] sm:$0xff]
    %v334 = vld [vmem:[#allocation5 + $0x78] sm:$0xff]
    %v335 = vld [vmem:[#allocation5 + $0x80] sm:$0xff]
    %v336 = vld [vmem:[#allocation5 + $0x88] sm:$0xff]
    %v337 = vld [vmem:[#allocation5 + $0x90] sm:$0xff]
    %v338 = vld [vmem:[#allocation5 + $0x98] sm:$0xff]
    %v339 = vld [vmem:[#allocation5 + $0xa0] sm:$0xff]
    %v340 = vld [vmem:[#allocation5 + $0xa8] sm:$0xff]
    %v341 = vld [vmem:[#allocation5 + $0xb0] sm:$0xff]
    %v342 = vld [vmem:[#allocation5 + $0xb8] sm:$0xff]
    %v343 = vld [vmem:[#allocation5 + $0xc0] sm:$0xff]
    %v344 = vld [vmem:[#allocation5 + $0xc8] sm:$0xff]
    %v345 = vld [vmem:[#allocation5 + $0xd0] sm:$0xff]
    %v346 = vld [vmem:[#allocation5 + $0xd8] sm:$0xff]
    %v347 = vld [vmem:[#allocation5 + $0xe0] sm:$0xff]
    %v348 = vld [vmem:[#allocation5 + $0xe8] sm:$0xff]
    %v349 = vld [vmem:[#allocation5 + $0xf0] sm:$0xff]
    %v350 = vld [vmem:[#allocation5 + $0xf8] sm:$0xff]
    %v351 = vld [vmem:[#allocation5 + $0x100] sm:$0xff]
    %v352 = vld [vmem:[#allocation5 + $0x108] sm:$0xff]
    %v353 = vld [vmem:[#allocation5 + $0x110] sm:$0xff]
    %v354 = vld [vmem:[#allocation5 + $0x118] sm:$0xff]
    %v355 = vld [vmem:[#allocation5 + $0x120] sm:$0xff]
    %v356 = vld [vmem:[#allocation5 + $0x128] sm:$0xff]
    %v357 = vld [vmem:[#allocation5 + $0x130] sm:$0xff]
    %v358 = vld [vmem:[#allocation5 + $0x138] sm:$0xff]
    %v359 = vld [vmem:[#allocation5 + $0x140] sm:$0xff]
    %v360 = vld [vmem:[#allocation5 + $0x148] sm:$0xff]
    %v361 = vld [vmem:[#allocation5 + $0x150] sm:$0xff]
    %v362 = vld [vmem:[#allocation5 + $0x158] sm:$0xff]
    %v363 = vld [vmem:[#allocation5 + $0x160] sm:$0xff]
    %v364 = vld [vmem:[#allocation5 + $0x168] sm:$0xff]
    %v365 = vld [vmem:[#allocation5 + $0x170] sm:$0xff]
    %v366 = vld [vmem:[#allocation5 + $0x178] sm:$0xff]
    %v367 = vld [vmem:[#allocation5 + $0x180] sm:$0xff]
    %v368 = vld [vmem:[#allocation5 + $0x188] sm:$0xff]
    %v369 = vld [vmem:[#allocation5 + $0x190] sm:$0xff]
    %v370 = vld [vmem:[#allocation5 + $0x198] sm:$0xff]
    %v371 = vld [vmem:[#allocation5 + $0x1a0] sm:$0xff]
    %v372 = vld [vmem:[#allocation5 + $0x1a8] sm:$0xff]
    %v373 = vld [vmem:[#allocation5 + $0x1b0] sm:$0xff]
    %v374 = vld [vmem:[#allocation5 + $0x1b8] sm:$0xff]
    %v375 = vld [vmem:[#allocation5 + $0x1c0] sm:$0xff]
    %v376 = vld [vmem:[#allocation5 + $0x1c8] sm:$0xff]
    %v377 = vld [vmem:[#allocation5 + $0x1d0] sm:$0xff]
    %v378 = vld [vmem:[#allocation5 + $0x1d8] sm:$0xff]
    %v379 = vld [vmem:[#allocation5 + $0x1e0] sm:$0xff]
    %v380 = vld [vmem:[#allocation5 + $0x1e8] sm:$0xff]
    %v381 = vld [vmem:[#allocation5 + $0x1f0] sm:$0xff]
    %v382 = vld [vmem:[#allocation5 + $0x1f8] sm:$0xff]
    %v383 = vld [vmem:[#allocation2] sm:$0xff]
    %v384 = vld [vmem:[#allocation2 + $0x8] sm:$0xff]
    %v385 = vld [vmem:[#allocation2 + $0x10] sm:$0xff]
    %v386 = vld [vmem:[#allocation2 + $0x18] sm:$0xff]
    %387 = vmatpush.msra.mxu0 %v379
    %388 = vmatpush.msra.mxu0 %v375
    %389 = vmatpush.msra.mxu0 %v371
    %390 = vmatpush.msra.mxu0 %v367
    %391 = vmatpush.msra.mxu0 %v363
    %392 = vmatpush.msra.mxu0 %v359
    %393 = vmatpush.msra.mxu0 %v355
    %394 = vmatpush.msra.mxu0 %v351
    %395 = vmatpush.msra.mxu0 %v347
    %396 = vmatpush.msra.mxu0 %v343
    %397 = vmatpush.msra.mxu0 %v339
    %398 = vmatpush.msra.mxu0 %v335
    %399 = vmatpush.msra.mxu0 %v331
    %400 = vmatpush.msra.mxu0 %v327
    %401 = vmatpush.msra.mxu0 %v323
    %402 = vmatpush.msra.mxu0 %v319
    %403 = vmatmul.f32.gmra.mxu0 0.0
    %v404 = vpop.f32.mrf.mxu0
    %v405 = vadd.f32 0.0, %v404
    %406 = vdwg.mxu0
    %407 = vmatpush.msra.mxu0 %v380
    %408 = vmatpush.msra.mxu0 %v376
    %409 = vmatpush.msra.mxu0 %v372
    %410 = vmatpush.msra.mxu0 %v368
    %411 = vmatpush.msra.mxu0 %v364
    %412 = vmatpush.msra.mxu0 %v360
    %413 = vmatpush.msra.mxu0 %v356
    %414 = vmatpush.msra.mxu0 %v352
    %415 = vmatpush.msra.mxu0 %v348
    %416 = vmatpush.msra.mxu0 %v344
    %417 = vmatpush.msra.mxu0 %v340
    %418 = vmatpush.msra.mxu0 %v336
    %419 = vmatpush.msra.mxu0 %v332
    %420 = vmatpush.msra.mxu0 %v328
    %421 = vmatpush.msra.mxu0 %v324
    %422 = vmatpush.msra.mxu0 %v320
    %423 = vmatmul.f32.gmra.mxu0 0.0
    %v424 = vpop.f32.mrf.mxu0
    %v425 = vadd.f32 0.0, %v424
    %426 = vdwg.mxu0
    %427 = vmatpush.msra.mxu0 %v381
    %428 = vmatpush.msra.mxu0 %v377
    %429 = vmatpush.msra.mxu0 %v373
    %430 = vmatpush.msra.mxu0 %v369
    %431 = vmatpush.msra.mxu0 %v365
    %432 = vmatpush.msra.mxu0 %v361
    %433 = vmatpush.msra.mxu0 %v357
    %434 = vmatpush.msra.mxu0 %v353
    %435 = vmatpush.msra.mxu0 %v349
    %436 = vmatpush.msra.mxu0 %v345
    %437 = vmatpush.msra.mxu0 %v341
    %438 = vmatpush.msra.mxu0 %v337
    %439 = vmatpush.msra.mxu0 %v333
    %440 = vmatpush.msra.mxu0 %v329
    %441 = vmatpush.msra.mxu0 %v325
    %442 = vmatpush.msra.mxu0 %v321
    %443 = vmatmul.f32.gmra.mxu0 0.0
    %v444 = vpop.f32.mrf.mxu0
    %v445 = vadd.f32 0.0, %v444
    %446 = vdwg.mxu0
    %447 = vmatpush.msra.mxu0 %v382
    %448 = vmatpush.msra.mxu0 %v378
    %449 = vmatpush.msra.mxu0 %v374
    %450 = vmatpush.msra.mxu0 %v370
    %451 = vmatpush.msra.mxu0 %v366
    %452 = vmatpush.msra.mxu0 %v362
    %453 = vmatpush.msra.mxu0 %v358
    %454 = vmatpush.msra.mxu0 %v354
    %455 = vmatpush.msra.mxu0 %v350
    %456 = vmatpush.msra.mxu0 %v346
    %457 = vmatpush.msra.mxu0 %v342
    %458 = vmatpush.msra.mxu0 %v338
    %459 = vmatpush.msra.mxu0 %v334
    %460 = vmatpush.msra.mxu0 %v330
    %461 = vmatpush.msra.mxu0 %v326
    %462 = vmatpush.msra.mxu0 %v322
    %463 = vmatmul.f32.gmra.mxu0 0.0
    %v464 = vpop.f32.mrf.mxu0
    %v465 = vadd.f32 0.0, %v464
    %466 = vdwg.mxu0
    %v467 = vadd.f32 %v383, %v405
    %v468 = vadd.f32 %v384, %v425
    %v469 = vadd.f32 %v385, %v445
    %v470 = vadd.f32 %v386, %v465
    %v471 = vxor.u32 %v467, 2147483648
    %v472 = vmul.f32 %v471, 1.442695
    %v473 = vpow.pop %v472
    %v474 = vadd.f32 %v473, 1.0
    %v475 = vrcp.pop %v474
    %v476 = vmul.f32 %v474, %v475
    %v477 = vsub.f32 1.0, %v476
    %v478 = vmul.f32 %v475, %v477
    %v479 = vadd.f32 %v475, %v478
    %vm480 = vweird.f32 %v474
    %vm481 = vweird.f32 %v475
    %vm482 = vmor %vm480, %vm481
    %v483 = vsel %vm482, %v475, %v479
    %v484 = vand.u32 2147483647, %v474
    %vm485 = vcmp.eq.f32.partialorder %v484, 8.507059e+37
    %v486 = vand.u32 %v474, 2147483648
    %v487 = vor.u32 1.1754944e-38, %v486
    %v488 = vsel %vm485, %v487, %v483
    %v489 = vmul.f32 1.0, %v488
    %v490 = vxor.u32 %v468, 2147483648
    %v491 = vmul.f32 %v490, 1.442695
    %v492 = vpow.pop %v491
    %v493 = vadd.f32 %v492, 1.0
    %v494 = vrcp.pop %v493
    %v495 = vmul.f32 %v493, %v494
    %v496 = vsub.f32 1.0, %v495
    %v497 = vmul.f32 %v494, %v496
    %v498 = vadd.f32 %v494, %v497
    %vm499 = vweird.f32 %v493
    %vm500 = vweird.f32 %v494
    %vm501 = vmor %vm499, %vm500
    %v502 = vsel %vm501, %v494, %v498
    %v503 = vand.u32 2147483647, %v493
    %vm504 = vcmp.eq.f32.partialorder %v503, 8.507059e+37
    %v505 = vand.u32 %v493, 2147483648
    %v506 = vor.u32 1.1754944e-38, %v505
    %v507 = vsel %vm504, %v506, %v502
    %v508 = vmul.f32 1.0, %v507
    %v509 = vtanh.pop %v469
    %v510 = vxor.u32 %v470, 2147483648
    %v511 = vmul.f32 %v510, 1.442695
    %v512 = vpow.pop %v511
    %v513 = vadd.f32 %v512, 1.0
    %v514 = vrcp.pop %v513
    %v515 = vmul.f32 %v513, %v514
    %v516 = vsub.f32 1.0, %v515
    %v517 = vmul.f32 %v514, %v516
    %v518 = vadd.f32 %v514, %v517
    %vm519 = vweird.f32 %v513
    %vm520 = vweird.f32 %v514
    %vm521 = vmor %vm519, %vm520
    %v522 = vsel %vm521, %v514, %v518
    %v523 = vand.u32 2147483647, %v513
    %vm524 = vcmp.eq.f32.partialorder %v523, 8.507059e+37
    %v525 = vand.u32 %v513, 2147483648
    %v526 = vor.u32 1.1754944e-38, %v525
    %v527 = vsel %vm524, %v526, %v522
    %v528 = vmul.f32 1.0, %v527
    %v529 = vmul.f32 %v508, 0.0
    %v530 = vmul.f32 %v489, %v509
    %v531 = vadd.f32 %v529, %v530
    %v532 = vtanh.pop %v531
    %v533 = vmul.f32 %v528, %v532
    %v534 = vld [vmem:[#allocation2 + $0x20] sm:$0xff]
    %v535 = vld [vmem:[#allocation2 + $0x28] sm:$0xff]
    %v536 = vld [vmem:[#allocation2 + $0x30] sm:$0xff]
    %v537 = vld [vmem:[#allocation2 + $0x38] sm:$0xff]
    %538 = vmatpush.msra.mxu0 %v379
    %539 = vmatpush.msra.mxu0 %v375
    %540 = vmatpush.msra.mxu0 %v371
    %541 = vmatpush.msra.mxu0 %v367
    %542 = vmatpush.msra.mxu0 %v363
    %543 = vmatpush.msra.mxu0 %v359
    %544 = vmatpush.msra.mxu0 %v355
    %545 = vmatpush.msra.mxu0 %v351
    %546 = vmatpush.msra.mxu0 %v347
    %547 = vmatpush.msra.mxu0 %v343
    %548 = vmatpush.msra.mxu0 %v339
    %549 = vmatpush.msra.mxu0 %v335
    %550 = vmatpush.msra.mxu0 %v331
    %551 = vmatpush.msra.mxu0 %v327
    %552 = vmatpush.msra.mxu0 %v323
    %553 = vmatpush.msra.mxu0 %v319
    %554 = vmatmul.f32.gmra.mxu0 %v533
    %v555 = vpop.f32.mrf.mxu0
    %v556 = vadd.f32 0.0, %v555
    %557 = vdwg.mxu0
    %558 = vmatpush.msra.mxu0 %v380
    %559 = vmatpush.msra.mxu0 %v376
    %560 = vmatpush.msra.mxu0 %v372
    %561 = vmatpush.msra.mxu0 %v368
    %562 = vmatpush.msra.mxu0 %v364
    %563 = vmatpush.msra.mxu0 %v360
    %564 = vmatpush.msra.mxu0 %v356
    %565 = vmatpush.msra.mxu0 %v352
    %566 = vmatpush.msra.mxu0 %v348
    %567 = vmatpush.msra.mxu0 %v344
    %568 = vmatpush.msra.mxu0 %v340
    %569 = vmatpush.msra.mxu0 %v336
    %570 = vmatpush.msra.mxu0 %v332
    %571 = vmatpush.msra.mxu0 %v328
    %572 = vmatpush.msra.mxu0 %v324
    %573 = vmatpush.msra.mxu0 %v320
    %574 = vmatmul.f32.gmra.mxu0 %v533
    %v575 = vpop.f32.mrf.mxu0
    %v576 = vadd.f32 0.0, %v575
    %577 = vdwg.mxu0
    %578 = vmatpush.msra.mxu0 %v381
    %579 = vmatpush.msra.mxu0 %v377
    %580 = vmatpush.msra.mxu0 %v373
    %581 = vmatpush.msra.mxu0 %v369
    %582 = vmatpush.msra.mxu0 %v365
    %583 = vmatpush.msra.mxu0 %v361
    %584 = vmatpush.msra.mxu0 %v357
    %585 = vmatpush.msra.mxu0 %v353
    %586 = vmatpush.msra.mxu0 %v349
    %587 = vmatpush.msra.mxu0 %v345
    %588 = vmatpush.msra.mxu0 %v341
    %589 = vmatpush.msra.mxu0 %v337
    %590 = vmatpush.msra.mxu0 %v333
    %591 = vmatpush.msra.mxu0 %v329
    %592 = vmatpush.msra.mxu0 %v325
    %593 = vmatpush.msra.mxu0 %v321
    %594 = vmatmul.f32.gmra.mxu0 %v533
    %v595 = vpop.f32.mrf.mxu0
    %v596 = vadd.f32 0.0, %v595
    %597 = vdwg.mxu0
    %598 = vmatpush.msra.mxu0 %v382
    %599 = vmatpush.msra.mxu0 %v378
    %600 = vmatpush.msra.mxu0 %v374
    %601 = vmatpush.msra.mxu0 %v370
    %602 = vmatpush.msra.mxu0 %v366
    %603 = vmatpush.msra.mxu0 %v362
    %604 = vmatpush.msra.mxu0 %v358
    %605 = vmatpush.msra.mxu0 %v354
    %606 = vmatpush.msra.mxu0 %v350
    %607 = vmatpush.msra.mxu0 %v346
    %608 = vmatpush.msra.mxu0 %v342
    %609 = vmatpush.msra.mxu0 %v338
    %610 = vmatpush.msra.mxu0 %v334
    %611 = vmatpush.msra.mxu0 %v330
    %612 = vmatpush.msra.mxu0 %v326
    %613 = vmatpush.msra.mxu0 %v322
    %614 = vmatmul.f32.gmra.mxu0 %v533
    %v615 = vpop.f32.mrf.mxu0
    %v616 = vadd.f32 0.0, %v615
    %617 = vdwg.mxu0
    %v618 = vadd.f32 %v534, %v556
    %v619 = vadd.f32 %v535, %v576
    %v620 = vadd.f32 %v536, %v596
    %v621 = vadd.f32 %v537, %v616
    %v622 = vxor.u32 %v618, 2147483648
    %v623 = vmul.f32 %v622, 1.442695
    %v624 = vpow.pop %v623
    %v625 = vadd.f32 %v624, 1.0
    %v626 = vrcp.pop %v625
    %v627 = vmul.f32 %v625, %v626
    %v628 = vsub.f32 1.0, %v627
    %v629 = vmul.f32 %v626, %v628
    %v630 = vadd.f32 %v626, %v629
    %vm631 = vweird.f32 %v625
    %vm632 = vweird.f32 %v626
    %vm633 = vmor %vm631, %vm632
    %v634 = vsel %vm633, %v626, %v630
    %v635 = vand.u32 2147483647, %v625
    %vm636 = vcmp.eq.f32.partialorder %v635, 8.507059e+37
    %v637 = vand.u32 %v625, 2147483648
    %v638 = vor.u32 1.1754944e-38, %v637
    %v639 = vsel %vm636, %v638, %v634
    %v640 = vmul.f32 1.0, %v639
    %v641 = vxor.u32 %v619, 2147483648
    %v642 = vmul.f32 %v641, 1.442695
    %v643 = vpow.pop %v642
    %v644 = vadd.f32 %v643, 1.0
    %v645 = vrcp.pop %v644
    %v646 = vmul.f32 %v644, %v645
    %v647 = vsub.f32 1.0, %v646
    %v648 = vmul.f32 %v645, %v647
    %v649 = vadd.f32 %v645, %v648
    %vm650 = vweird.f32 %v644
    %vm651 = vweird.f32 %v645
    %vm652 = vmor %vm650, %vm651
    %v653 = vsel %vm652, %v645, %v649
    %v654 = vand.u32 2147483647, %v644
    %vm655 = vcmp.eq.f32.partialorder %v654, 8.507059e+37
    %v656 = vand.u32 %v644, 2147483648
    %v657 = vor.u32 1.1754944e-38, %v656
    %v658 = vsel %vm655, %v657, %v653
    %v659 = vmul.f32 1.0, %v658
    %v660 = vtanh.pop %v620
    %v661 = vxor.u32 %v621, 2147483648
    %v662 = vmul.f32 %v661, 1.442695
    %v663 = vpow.pop %v662
    %v664 = vadd.f32 %v663, 1.0
    %v665 = vrcp.pop %v664
    %v666 = vmul.f32 %v664, %v665
    %v667 = vsub.f32 1.0, %v666
    %v668 = vmul.f32 %v665, %v667
    %v669 = vadd.f32 %v665, %v668
    %vm670 = vweird.f32 %v664
    %vm671 = vweird.f32 %v665
    %vm672 = vmor %vm670, %vm671
    %v673 = vsel %vm672, %v665, %v669
    %v674 = vand.u32 2147483647, %v664
    %vm675 = vcmp.eq.f32.partialorder %v674, 8.507059e+37
    %v676 = vand.u32 %v664, 2147483648
    %v677 = vor.u32 1.1754944e-38, %v676
    %v678 = vsel %vm675, %v677, %v673
    %v679 = vmul.f32 1.0, %v678
    %v680 = vmul.f32 %v659, %v531
    %v681 = vmul.f32 %v640, %v660
    %v682 = vadd.f32 %v680, %v681
    %v683 = vtanh.pop %v682
    %v684 = vmul.f32 %v679, %v683
    %v685 = vld [vmem:[#allocation2 + $0x40] sm:$0xff]
    %v686 = vld [vmem:[#allocation2 + $0x48] sm:$0xff]
    %v687 = vld [vmem:[#allocation2 + $0x50] sm:$0xff]
    %v688 = vld [vmem:[#allocation2 + $0x58] sm:$0xff]
    %689 = vmatpush.msra.mxu0 %v379
    %690 = vmatpush.msra.mxu0 %v375
    %691 = vmatpush.msra.mxu0 %v371
    %692 = vmatpush.msra.mxu0 %v367
    %693 = vmatpush.msra.mxu0 %v363
    %694 = vmatpush.msra.mxu0 %v359
    %695 = vmatpush.msra.mxu0 %v355
    %696 = vmatpush.msra.mxu0 %v351
    %697 = vmatpush.msra.mxu0 %v347
    %698 = vmatpush.msra.mxu0 %v343
    %699 = vmatpush.msra.mxu0 %v339
    %700 = vmatpush.msra.mxu0 %v335
    %701 = vmatpush.msra.mxu0 %v331
    %702 = vmatpush.msra.mxu0 %v327
    %703 = vmatpush.msra.mxu0 %v323
    %704 = vmatpush.msra.mxu0 %v319
    %705 = vmatmul.f32.gmra.mxu0 %v684
    %v706 = vpop.f32.mrf.mxu0
    %v707 = vadd.f32 0.0, %v706
    %708 = vdwg.mxu0
    %709 = vmatpush.msra.mxu0 %v380
    %710 = vmatpush.msra.mxu0 %v376
    %711 = vmatpush.msra.mxu0 %v372
    %712 = vmatpush.msra.mxu0 %v368
    %713 = vmatpush.msra.mxu0 %v364
    %714 = vmatpush.msra.mxu0 %v360
    %715 = vmatpush.msra.mxu0 %v356
    %716 = vmatpush.msra.mxu0 %v352
    %717 = vmatpush.msra.mxu0 %v348
    %718 = vmatpush.msra.mxu0 %v344
    %719 = vmatpush.msra.mxu0 %v340
    %720 = vmatpush.msra.mxu0 %v336
    %721 = vmatpush.msra.mxu0 %v332
    %722 = vmatpush.msra.mxu0 %v328
    %723 = vmatpush.msra.mxu0 %v324
    %724 = vmatpush.msra.mxu0 %v320
    %725 = vmatmul.f32.gmra.mxu0 %v684
    %v726 = vpop.f32.mrf.mxu0
    %v727 = vadd.f32 0.0, %v726
    %728 = vdwg.mxu0
    %729 = vmatpush.msra.mxu0 %v381
    %730 = vmatpush.msra.mxu0 %v377
    %731 = vmatpush.msra.mxu0 %v373
    %732 = vmatpush.msra.mxu0 %v369
    %733 = vmatpush.msra.mxu0 %v365
    %734 = vmatpush.msra.mxu0 %v361
    %735 = vmatpush.msra.mxu0 %v357
    %736 = vmatpush.msra.mxu0 %v353
    %737 = vmatpush.msra.mxu0 %v349
    %738 = vmatpush.msra.mxu0 %v345
    %739 = vmatpush.msra.mxu0 %v341
    %740 = vmatpush.msra.mxu0 %v337
    %741 = vmatpush.msra.mxu0 %v333
    %742 = vmatpush.msra.mxu0 %v329
    %743 = vmatpush.msra.mxu0 %v325
    %744 = vmatpush.msra.mxu0 %v321
    %745 = vmatmul.f32.gmra.mxu0 %v684
    %v746 = vpop.f32.mrf.mxu0
    %v747 = vadd.f32 0.0, %v746
    %748 = vdwg.mxu0
    %749 = vmatpush.msra.mxu0 %v382
    %750 = vmatpush.msra.mxu0 %v378
    %751 = vmatpush.msra.mxu0 %v374
    %752 = vmatpush.msra.mxu0 %v370
    %753 = vmatpush.msra.mxu0 %v366
    %754 = vmatpush.msra.mxu0 %v362
    %755 = vmatpush.msra.mxu0 %v358
    %756 = vmatpush.msra.mxu0 %v354
    %757 = vmatpush.msra.mxu0 %v350
    %758 = vmatpush.msra.mxu0 %v346
    %759 = vmatpush.msra.mxu0 %v342
    %760 = vmatpush.msra.mxu0 %v338
    %761 = vmatpush.msra.mxu0 %v334
    %762 = vmatpush.msra.mxu0 %v330
    %763 = vmatpush.msra.mxu0 %v326
    %764 = vmatpush.msra.mxu0 %v322
    %765 = vmatmul.f32.gmra.mxu0 %v684
    %v766 = vpop.f32.mrf.mxu0
    %v767 = vadd.f32 0.0, %v766
    %768 = vdwg.mxu0
    %v769 = vadd.f32 %v685, %v707
    %v770 = vadd.f32 %v686, %v727
    %v771 = vadd.f32 %v687, %v747
    %v772 = vadd.f32 %v688, %v767
    %v773 = vxor.u32 %v769, 2147483648
    %v774 = vmul.f32 %v773, 1.442695
    %v775 = vpow.pop %v774
    %v776 = vadd.f32 %v775, 1.0
    %v777 = vrcp.pop %v776
    %v778 = vmul.f32 %v776, %v777
    %v779 = vsub.f32 1.0, %v778
    %v780 = vmul.f32 %v777, %v779
    %v781 = vadd.f32 %v777, %v780
    %vm782 = vweird.f32 %v776
    %vm783 = vweird.f32 %v777
    %vm784 = vmor %vm782, %vm783
    %v785 = vsel %vm784, %v777, %v781
    %v786 = vand.u32 2147483647, %v776
    %vm787 = vcmp.eq.f32.partialorder %v786, 8.507059e+37
    %v788 = vand.u32 %v776, 2147483648
    %v789 = vor.u32 1.1754944e-38, %v788
    %v790 = vsel %vm787, %v789, %v785
    %v791 = vmul.f32 1.0, %v790
    %v792 = vxor.u32 %v770, 2147483648
    %v793 = vmul.f32 %v792, 1.442695
    %v794 = vpow.pop %v793
    %v795 = vadd.f32 %v794, 1.0
    %v796 = vrcp.pop %v795
    %v797 = vmul.f32 %v795, %v796
    %v798 = vsub.f32 1.0, %v797
    %v799 = vmul.f32 %v796, %v798
    %v800 = vadd.f32 %v796, %v799
    %vm801 = vweird.f32 %v795
    %vm802 = vweird.f32 %v796
    %vm803 = vmor %vm801, %vm802
    %v804 = vsel %vm803, %v796, %v800
    %v805 = vand.u32 2147483647, %v795
    %vm806 = vcmp.eq.f32.partialorder %v805, 8.507059e+37
    %v807 = vand.u32 %v795, 2147483648
    %v808 = vor.u32 1.1754944e-38, %v807
    %v809 = vsel %vm806, %v808, %v804
    %v810 = vmul.f32 1.0, %v809
    %v811 = vtanh.pop %v771
    %v812 = vxor.u32 %v772, 2147483648
    %v813 = vmul.f32 %v812, 1.442695
    %v814 = vpow.pop %v813
    %v815 = vadd.f32 %v814, 1.0
    %v816 = vrcp.pop %v815
    %v817 = vmul.f32 %v815, %v816
    %v818 = vsub.f32 1.0, %v817
    %v819 = vmul.f32 %v816, %v818
    %v820 = vadd.f32 %v816, %v819
    %vm821 = vweird.f32 %v815
    %vm822 = vweird.f32 %v816
    %vm823 = vmor %vm821, %vm822
    %v824 = vsel %vm823, %v816, %v820
    %v825 = vand.u32 2147483647, %v815
    %vm826 = vcmp.eq.f32.partialorder %v825, 8.507059e+37
    %v827 = vand.u32 %v815, 2147483648
    %v828 = vor.u32 1.1754944e-38, %v827
    %v829 = vsel %vm826, %v828, %v824
    %v830 = vmul.f32 1.0, %v829
    %v831 = vmul.f32 %v810, %v682
    %v832 = vmul.f32 %v791, %v811
    %v833 = vadd.f32 %v831, %v832
    %v834 = vtanh.pop %v833
    %v835 = vmul.f32 %v830, %v834
    %v836 = vld [vmem:[#allocation2 + $0x60] sm:$0xff]
    %v837 = vld [vmem:[#allocation2 + $0x68] sm:$0xff]
    %v838 = vld [vmem:[#allocation2 + $0x70] sm:$0xff]
    %v839 = vld [vmem:[#allocation2 + $0x78] sm:$0xff]
    %840 = vmatpush.msra.mxu0 %v379
    %841 = vmatpush.msra.mxu0 %v375
    %842 = vmatpush.msra.mxu0 %v371
    %843 = vmatpush.msra.mxu0 %v367
    %844 = vmatpush.msra.mxu0 %v363
    %845 = vmatpush.msra.mxu0 %v359
    %846 = vmatpush.msra.mxu0 %v355
    %847 = vmatpush.msra.mxu0 %v351
    %848 = vmatpush.msra.mxu0 %v347
    %849 = vmatpush.msra.mxu0 %v343
    %850 = vmatpush.msra.mxu0 %v339
    %851 = vmatpush.msra.mxu0 %v335
    %852 = vmatpush.msra.mxu0 %v331
    %853 = vmatpush.msra.mxu0 %v327
    %854 = vmatpush.msra.mxu0 %v323
    %855 = vmatpush.msra.mxu0 %v319
    %856 = vmatmul.f32.gmra.mxu0 %v835
    %v857 = vpop.f32.mrf.mxu0
    %v858 = vadd.f32 0.0, %v857
    %859 = vdwg.mxu0
    %860 = vmatpush.msra.mxu0 %v380
    %861 = vmatpush.msra.mxu0 %v376
    %862 = vmatpush.msra.mxu0 %v372
    %863 = vmatpush.msra.mxu0 %v368
    %864 = vmatpush.msra.mxu0 %v364
    %865 = vmatpush.msra.mxu0 %v360
    %866 = vmatpush.msra.mxu0 %v356
    %867 = vmatpush.msra.mxu0 %v352
    %868 = vmatpush.msra.mxu0 %v348
    %869 = vmatpush.msra.mxu0 %v344
    %870 = vmatpush.msra.mxu0 %v340
    %871 = vmatpush.msra.mxu0 %v336
    %872 = vmatpush.msra.mxu0 %v332
    %873 = vmatpush.msra.mxu0 %v328
    %874 = vmatpush.msra.mxu0 %v324
    %875 = vmatpush.msra.mxu0 %v320
    %876 = vmatmul.f32.gmra.mxu0 %v835
    %v877 = vpop.f32.mrf.mxu0
    %v878 = vadd.f32 0.0, %v877
    %879 = vdwg.mxu0
    %880 = vmatpush.msra.mxu0 %v381
    %881 = vmatpush.msra.mxu0 %v377
    %882 = vmatpush.msra.mxu0 %v373
    %883 = vmatpush.msra.mxu0 %v369
    %884 = vmatpush.msra.mxu0 %v365
    %885 = vmatpush.msra.mxu0 %v361
    %886 = vmatpush.msra.mxu0 %v357
    %887 = vmatpush.msra.mxu0 %v353
    %888 = vmatpush.msra.mxu0 %v349
    %889 = vmatpush.msra.mxu0 %v345
    %890 = vmatpush.msra.mxu0 %v341
    %891 = vmatpush.msra.mxu0 %v337
    %892 = vmatpush.msra.mxu0 %v333
    %893 = vmatpush.msra.mxu0 %v329
    %894 = vmatpush.msra.mxu0 %v325
    %895 = vmatpush.msra.mxu0 %v321
    %896 = vmatmul.f32.gmra.mxu0 %v835
    %v897 = vpop.f32.mrf.mxu0
    %v898 = vadd.f32 0.0, %v897
    %899 = vdwg.mxu0
    %900 = vmatpush.msra.mxu0 %v382
    %901 = vmatpush.msra.mxu0 %v378
    %902 = vmatpush.msra.mxu0 %v374
    %903 = vmatpush.msra.mxu0 %v370
    %904 = vmatpush.msra.mxu0 %v366
    %905 = vmatpush.msra.mxu0 %v362
    %906 = vmatpush.msra.mxu0 %v358
    %907 = vmatpush.msra.mxu0 %v354
    %908 = vmatpush.msra.mxu0 %v350
    %909 = vmatpush.msra.mxu0 %v346
    %910 = vmatpush.msra.mxu0 %v342
    %911 = vmatpush.msra.mxu0 %v338
    %912 = vmatpush.msra.mxu0 %v334
    %913 = vmatpush.msra.mxu0 %v330
    %914 = vmatpush.msra.mxu0 %v326
    %915 = vmatpush.msra.mxu0 %v322
    %916 = vmatmul.f32.gmra.mxu0 %v835
    %v917 = vpop.f32.mrf.mxu0
    %v918 = vadd.f32 0.0, %v917
    %919 = vdwg.mxu0
    %v920 = vadd.f32 %v836, %v858
    %v921 = vadd.f32 %v837, %v878
    %v922 = vadd.f32 %v838, %v898
    %v923 = vadd.f32 %v839, %v918
    %v924 = vxor.u32 %v920, 2147483648
    %v925 = vmul.f32 %v924, 1.442695
    %v926 = vpow.pop %v925
    %v927 = vadd.f32 %v926, 1.0
    %v928 = vrcp.pop %v927
    %v929 = vmul.f32 %v927, %v928
    %v930 = vsub.f32 1.0, %v929
    %v931 = vmul.f32 %v928, %v930
    %v932 = vadd.f32 %v928, %v931
    %vm933 = vweird.f32 %v927
    %vm934 = vweird.f32 %v928
    %vm935 = vmor %vm933, %vm934
    %v936 = vsel %vm935, %v928, %v932
    %v937 = vand.u32 2147483647, %v927
    %vm938 = vcmp.eq.f32.partialorder %v937, 8.507059e+37
    %v939 = vand.u32 %v927, 2147483648
    %v940 = vor.u32 1.1754944e-38, %v939
    %v941 = vsel %vm938, %v940, %v936
    %v942 = vmul.f32 1.0, %v941
    %v943 = vxor.u32 %v921, 2147483648
    %v944 = vmul.f32 %v943, 1.442695
    %v945 = vpow.pop %v944
    %v946 = vadd.f32 %v945, 1.0
    %v947 = vrcp.pop %v946
    %v948 = vmul.f32 %v946, %v947
    %v949 = vsub.f32 1.0, %v948
    %v950 = vmul.f32 %v947, %v949
    %v951 = vadd.f32 %v947, %v950
    %vm952 = vweird.f32 %v946
    %vm953 = vweird.f32 %v947
    %vm954 = vmor %vm952, %vm953
    %v955 = vsel %vm954, %v947, %v951
    %v956 = vand.u32 2147483647, %v946
    %vm957 = vcmp.eq.f32.partialorder %v956, 8.507059e+37
    %v958 = vand.u32 %v946, 2147483648
    %v959 = vor.u32 1.1754944e-38, %v958
    %v960 = vsel %vm957, %v959, %v955
    %v961 = vmul.f32 1.0, %v960
    %v962 = vtanh.pop %v922
    %v963 = vxor.u32 %v923, 2147483648
    %v964 = vmul.f32 %v963, 1.442695
    %v965 = vpow.pop %v964
    %v966 = vadd.f32 %v965, 1.0
    %v967 = vrcp.pop %v966
    %v968 = vmul.f32 %v966, %v967
    %v969 = vsub.f32 1.0, %v968
    %v970 = vmul.f32 %v967, %v969
    %v971 = vadd.f32 %v967, %v970
    %vm972 = vweird.f32 %v966
    %vm973 = vweird.f32 %v967
    %vm974 = vmor %vm972, %vm973
    %v975 = vsel %vm974, %v967, %v971
    %v976 = vand.u32 2147483647, %v966
    %vm977 = vcmp.eq.f32.partialorder %v976, 8.507059e+37
    %v978 = vand.u32 %v966, 2147483648
    %v979 = vor.u32 1.1754944e-38, %v978
    %v980 = vsel %vm977, %v979, %v975
    %v981 = vmul.f32 1.0, %v980
    %v982 = vmul.f32 %v961, %v833
    %v983 = vmul.f32 %v942, %v962
    %v984 = vadd.f32 %v982, %v983
    %v985 = vtanh.pop %v984
    %v986 = vmul.f32 %v981, %v985
    %v987 = vld [vmem:[#allocation2 + $0x80] sm:$0xff]
    %v988 = vld [vmem:[#allocation2 + $0x88] sm:$0xff]
    %v989 = vld [vmem:[#allocation2 + $0x90] sm:$0xff]
    %v990 = vld [vmem:[#allocation2 + $0x98] sm:$0xff]
    %991 = vmatpush.msra.mxu0 %v379
    %992 = vmatpush.msra.mxu0 %v375
    %993 = vmatpush.msra.mxu0 %v371
    %994 = vmatpush.msra.mxu0 %v367
    %995 = vmatpush.msra.mxu0 %v363
    %996 = vmatpush.msra.mxu0 %v359
    %997 = vmatpush.msra.mxu0 %v355
    %998 = vmatpush.msra.mxu0 %v351
    %999 = vmatpush.msra.mxu0 %v347
    %1000 = vmatpush.msra.mxu0 %v343
    %1001 = vmatpush.msra.mxu0 %v339
    %1002 = vmatpush.msra.mxu0 %v335
    %1003 = vmatpush.msra.mxu0 %v331
    %1004 = vmatpush.msra.mxu0 %v327
    %1005 = vmatpush.msra.mxu0 %v323
    %1006 = vmatpush.msra.mxu0 %v319
    %1007 = vmatmul.f32.gmra.mxu0 %v986
    %v1008 = vpop.f32.mrf.mxu0
    %v1009 = vadd.f32 0.0, %v1008
    %1010 = vdwg.mxu0
    %1011 = vmatpush.msra.mxu0 %v380
    %1012 = vmatpush.msra.mxu0 %v376
    %1013 = vmatpush.msra.mxu0 %v372
    %1014 = vmatpush.msra.mxu0 %v368
    %1015 = vmatpush.msra.mxu0 %v364
    %1016 = vmatpush.msra.mxu0 %v360
    %1017 = vmatpush.msra.mxu0 %v356
    %1018 = vmatpush.msra.mxu0 %v352
    %1019 = vmatpush.msra.mxu0 %v348
    %1020 = vmatpush.msra.mxu0 %v344
    %1021 = vmatpush.msra.mxu0 %v340
    %1022 = vmatpush.msra.mxu0 %v336
    %1023 = vmatpush.msra.mxu0 %v332
    %1024 = vmatpush.msra.mxu0 %v328
    %1025 = vmatpush.msra.mxu0 %v324
    %1026 = vmatpush.msra.mxu0 %v320
    %1027 = vmatmul.f32.gmra.mxu0 %v986
    %v1028 = vpop.f32.mrf.mxu0
    %v1029 = vadd.f32 0.0, %v1028
    %1030 = vdwg.mxu0
    %1031 = vmatpush.msra.mxu0 %v381
    %1032 = vmatpush.msra.mxu0 %v377
    %1033 = vmatpush.msra.mxu0 %v373
    %1034 = vmatpush.msra.mxu0 %v369
    %1035 = vmatpush.msra.mxu0 %v365
    %1036 = vmatpush.msra.mxu0 %v361
    %1037 = vmatpush.msra.mxu0 %v357
    %1038 = vmatpush.msra.mxu0 %v353
    %1039 = vmatpush.msra.mxu0 %v349
    %1040 = vmatpush.msra.mxu0 %v345
    %1041 = vmatpush.msra.mxu0 %v341
    %1042 = vmatpush.msra.mxu0 %v337
    %1043 = vmatpush.msra.mxu0 %v333
    %1044 = vmatpush.msra.mxu0 %v329
    %1045 = vmatpush.msra.mxu0 %v325
    %1046 = vmatpush.msra.mxu0 %v321
    %1047 = vmatmul.f32.gmra.mxu0 %v986
    %v1048 = vpop.f32.mrf.mxu0
    %v1049 = vadd.f32 0.0, %v1048
    %1050 = vdwg.mxu0
    %1051 = vmatpush.msra.mxu0 %v382
    %1052 = vmatpush.msra.mxu0 %v378
    %1053 = vmatpush.msra.mxu0 %v374
    %1054 = vmatpush.msra.mxu0 %v370
    %1055 = vmatpush.msra.mxu0 %v366
    %1056 = vmatpush.msra.mxu0 %v362
    %1057 = vmatpush.msra.mxu0 %v358
    %1058 = vmatpush.msra.mxu0 %v354
    %1059 = vmatpush.msra.mxu0 %v350
    %1060 = vmatpush.msra.mxu0 %v346
    %1061 = vmatpush.msra.mxu0 %v342
    %1062 = vmatpush.msra.mxu0 %v338
    %1063 = vmatpush.msra.mxu0 %v334
    %1064 = vmatpush.msra.mxu0 %v330
    %1065 = vmatpush.msra.mxu0 %v326
    %1066 = vmatpush.msra.mxu0 %v322
    %1067 = vmatmul.f32.gmra.mxu0 %v986
    %v1068 = vpop.f32.mrf.mxu0
    %v1069 = vadd.f32 0.0, %v1068
    %1070 = vdwg.mxu0
    %v1071 = vadd.f32 %v987, %v1009
    %v1072 = vadd.f32 %v988, %v1029
    %v1073 = vadd.f32 %v989, %v1049
    %v1074 = vadd.f32 %v990, %v1069
    %v1075 = vxor.u32 %v1071, 2147483648
    %v1076 = vmul.f32 %v1075, 1.442695
    %v1077 = vpow.pop %v1076
    %v1078 = vadd.f32 %v1077, 1.0
    %v1079 = vrcp.pop %v1078
    %v1080 = vmul.f32 %v1078, %v1079
    %v1081 = vsub.f32 1.0, %v1080
    %v1082 = vmul.f32 %v1079, %v1081
    %v1083 = vadd.f32 %v1079, %v1082
    %vm1084 = vweird.f32 %v1078
    %vm1085 = vweird.f32 %v1079
    %vm1086 = vmor %vm1084, %vm1085
    %v1087 = vsel %vm1086, %v1079, %v1083
    %v1088 = vand.u32 2147483647, %v1078
    %vm1089 = vcmp.eq.f32.partialorder %v1088, 8.507059e+37
    %v1090 = vand.u32 %v1078, 2147483648
    %v1091 = vor.u32 1.1754944e-38, %v1090
    %v1092 = vsel %vm1089, %v1091, %v1087
    %v1093 = vmul.f32 1.0, %v1092
    %v1094 = vxor.u32 %v1072, 2147483648
    %v1095 = vmul.f32 %v1094, 1.442695
    %v1096 = vpow.pop %v1095
    %v1097 = vadd.f32 %v1096, 1.0
    %v1098 = vrcp.pop %v1097
    %v1099 = vmul.f32 %v1097, %v1098
    %v1100 = vsub.f32 1.0, %v1099
    %v1101 = vmul.f32 %v1098, %v1100
    %v1102 = vadd.f32 %v1098, %v1101
    %vm1103 = vweird.f32 %v1097
    %vm1104 = vweird.f32 %v1098
    %vm1105 = vmor %vm1103, %vm1104
    %v1106 = vsel %vm1105, %v1098, %v1102
    %v1107 = vand.u32 2147483647, %v1097
    %vm1108 = vcmp.eq.f32.partialorder %v1107, 8.507059e+37
    %v1109 = vand.u32 %v1097, 2147483648
    %v1110 = vor.u32 1.1754944e-38, %v1109
    %v1111 = vsel %vm1108, %v1110, %v1106
    %v1112 = vmul.f32 1.0, %v1111
    %v1113 = vtanh.pop %v1073
    %v1114 = vxor.u32 %v1074, 2147483648
    %v1115 = vmul.f32 %v1114, 1.442695
    %v1116 = vpow.pop %v1115
    %v1117 = vadd.f32 %v1116, 1.0
    %v1118 = vrcp.pop %v1117
    %v1119 = vmul.f32 %v1117, %v1118
    %v1120 = vsub.f32 1.0, %v1119
    %v1121 = vmul.f32 %v1118, %v1120
    %v1122 = vadd.f32 %v1118, %v1121
    %vm1123 = vweird.f32 %v1117
    %vm1124 = vweird.f32 %v1118
    %vm1125 = vmor %vm1123, %vm1124
    %v1126 = vsel %vm1125, %v1118, %v1122
    %v1127 = vand.u32 2147483647, %v1117
    %vm1128 = vcmp.eq.f32.partialorder %v1127, 8.507059e+37
    %v1129 = vand.u32 %v1117, 2147483648
    %v1130 = vor.u32 1.1754944e-38, %v1129
    %v1131 = vsel %vm1128, %v1130, %v1126
    %v1132 = vmul.f32 1.0, %v1131
    %v1133 = vmul.f32 %v1112, %v984
    %v1134 = vmul.f32 %v1093, %v1113
    %v1135 = vadd.f32 %v1133, %v1134
    %v1136 = vtanh.pop %v1135
    %v1137 = vmul.f32 %v1132, %v1136
    %v1138 = vld [vmem:[#allocation2 + $0xa0] sm:$0xff]
    %v1139 = vld [vmem:[#allocation2 + $0xa8] sm:$0xff]
    %v1140 = vld [vmem:[#allocation2 + $0xb0] sm:$0xff]
    %v1141 = vld [vmem:[#allocation2 + $0xb8] sm:$0xff]
    %1142 = vmatpush.msra.mxu0 %v379
    %1143 = vmatpush.msra.mxu0 %v375
    %1144 = vmatpush.msra.mxu0 %v371
    %1145 = vmatpush.msra.mxu0 %v367
    %1146 = vmatpush.msra.mxu0 %v363
    %1147 = vmatpush.msra.mxu0 %v359
    %1148 = vmatpush.msra.mxu0 %v355
    %1149 = vmatpush.msra.mxu0 %v351
    %1150 = vmatpush.msra.mxu0 %v347
    %1151 = vmatpush.msra.mxu0 %v343
    %1152 = vmatpush.msra.mxu0 %v339
    %1153 = vmatpush.msra.mxu0 %v335
    %1154 = vmatpush.msra.mxu0 %v331
    %1155 = vmatpush.msra.mxu0 %v327
    %1156 = vmatpush.msra.mxu0 %v323
    %1157 = vmatpush.msra.mxu0 %v319
    %1158 = vmatmul.f32.gmra.mxu0 %v1137
    %v1159 = vpop.f32.mrf.mxu0
    %v1160 = vadd.f32 0.0, %v1159
    %1161 = vdwg.mxu0
    %1162 = vmatpush.msra.mxu0 %v380
    %1163 = vmatpush.msra.mxu0 %v376
    %1164 = vmatpush.msra.mxu0 %v372
    %1165 = vmatpush.msra.mxu0 %v368
    %1166 = vmatpush.msra.mxu0 %v364
    %1167 = vmatpush.msra.mxu0 %v360
    %1168 = vmatpush.msra.mxu0 %v356
    %1169 = vmatpush.msra.mxu0 %v352
    %1170 = vmatpush.msra.mxu0 %v348
    %1171 = vmatpush.msra.mxu0 %v344
    %1172 = vmatpush.msra.mxu0 %v340
    %1173 = vmatpush.msra.mxu0 %v336
    %1174 = vmatpush.msra.mxu0 %v332
    %1175 = vmatpush.msra.mxu0 %v328
    %1176 = vmatpush.msra.mxu0 %v324
    %1177 = vmatpush.msra.mxu0 %v320
    %1178 = vmatmul.f32.gmra.mxu0 %v1137
    %v1179 = vpop.f32.mrf.mxu0
    %v1180 = vadd.f32 0.0, %v1179
    %1181 = vdwg.mxu0
    %1182 = vmatpush.msra.mxu0 %v381
    %1183 = vmatpush.msra.mxu0 %v377
    %1184 = vmatpush.msra.mxu0 %v373
    %1185 = vmatpush.msra.mxu0 %v369
    %1186 = vmatpush.msra.mxu0 %v365
    %1187 = vmatpush.msra.mxu0 %v361
    %1188 = vmatpush.msra.mxu0 %v357
    %1189 = vmatpush.msra.mxu0 %v353
    %1190 = vmatpush.msra.mxu0 %v349
    %1191 = vmatpush.msra.mxu0 %v345
    %1192 = vmatpush.msra.mxu0 %v341
    %1193 = vmatpush.msra.mxu0 %v337
    %1194 = vmatpush.msra.mxu0 %v333
    %1195 = vmatpush.msra.mxu0 %v329
    %1196 = vmatpush.msra.mxu0 %v325
    %1197 = vmatpush.msra.mxu0 %v321
    %1198 = vmatmul.f32.gmra.mxu0 %v1137
    %v1199 = vpop.f32.mrf.mxu0
    %v1200 = vadd.f32 0.0, %v1199
    %1201 = vdwg.mxu0
    %1202 = vmatpush.msra.mxu0 %v382
    %1203 = vmatpush.msra.mxu0 %v378
    %1204 = vmatpush.msra.mxu0 %v374
    %1205 = vmatpush.msra.mxu0 %v370
    %1206 = vmatpush.msra.mxu0 %v366
    %1207 = vmatpush.msra.mxu0 %v362
    %1208 = vmatpush.msra.mxu0 %v358
    %1209 = vmatpush.msra.mxu0 %v354
    %1210 = vmatpush.msra.mxu0 %v350
    %1211 = vmatpush.msra.mxu0 %v346
    %1212 = vmatpush.msra.mxu0 %v342
    %1213 = vmatpush.msra.mxu0 %v338
    %1214 = vmatpush.msra.mxu0 %v334
    %1215 = vmatpush.msra.mxu0 %v330
    %1216 = vmatpush.msra.mxu0 %v326
    %1217 = vmatpush.msra.mxu0 %v322
    %1218 = vmatmul.f32.gmra.mxu0 %v1137
    %v1219 = vpop.f32.mrf.mxu0
    %v1220 = vadd.f32 0.0, %v1219
    %1221 = vdwg.mxu0
    %v1222 = vadd.f32 %v1138, %v1160
    %v1223 = vadd.f32 %v1139, %v1180
    %v1224 = vadd.f32 %v1140, %v1200
    %v1225 = vadd.f32 %v1141, %v1220
    %v1226 = vxor.u32 %v1222, 2147483648
    %v1227 = vmul.f32 %v1226, 1.442695
    %v1228 = vpow.pop %v1227
    %v1229 = vadd.f32 %v1228, 1.0
    %v1230 = vrcp.pop %v1229
    %v1231 = vmul.f32 %v1229, %v1230
    %v1232 = vsub.f32 1.0, %v1231
    %v1233 = vmul.f32 %v1230, %v1232
    %v1234 = vadd.f32 %v1230, %v1233
    %vm1235 = vweird.f32 %v1229
    %vm1236 = vweird.f32 %v1230
    %vm1237 = vmor %vm1235, %vm1236
    %v1238 = vsel %vm1237, %v1230, %v1234
    %v1239 = vand.u32 2147483647, %v1229
    %vm1240 = vcmp.eq.f32.partialorder %v1239, 8.507059e+37
    %v1241 = vand.u32 %v1229, 2147483648
    %v1242 = vor.u32 1.1754944e-38, %v1241
    %v1243 = vsel %vm1240, %v1242, %v1238
    %v1244 = vmul.f32 1.0, %v1243
    %v1245 = vxor.u32 %v1223, 2147483648
    %v1246 = vmul.f32 %v1245, 1.442695
    %v1247 = vpow.pop %v1246
    %v1248 = vadd.f32 %v1247, 1.0
    %v1249 = vrcp.pop %v1248
    %v1250 = vmul.f32 %v1248, %v1249
    %v1251 = vsub.f32 1.0, %v1250
    %v1252 = vmul.f32 %v1249, %v1251
    %v1253 = vadd.f32 %v1249, %v1252
    %vm1254 = vweird.f32 %v1248
    %vm1255 = vweird.f32 %v1249
    %vm1256 = vmor %vm1254, %vm1255
    %v1257 = vsel %vm1256, %v1249, %v1253
    %v1258 = vand.u32 2147483647, %v1248
    %vm1259 = vcmp.eq.f32.partialorder %v1258, 8.507059e+37
    %v1260 = vand.u32 %v1248, 2147483648
    %v1261 = vor.u32 1.1754944e-38, %v1260
    %v1262 = vsel %vm1259, %v1261, %v1257
    %v1263 = vmul.f32 1.0, %v1262
    %v1264 = vtanh.pop %v1224
    %v1265 = vxor.u32 %v1225, 2147483648
    %v1266 = vmul.f32 %v1265, 1.442695
    %v1267 = vpow.pop %v1266
    %v1268 = vadd.f32 %v1267, 1.0
    %v1269 = vrcp.pop %v1268
    %v1270 = vmul.f32 %v1268, %v1269
    %v1271 = vsub.f32 1.0, %v1270
    %v1272 = vmul.f32 %v1269, %v1271
    %v1273 = vadd.f32 %v1269, %v1272
    %vm1274 = vweird.f32 %v1268
    %vm1275 = vweird.f32 %v1269
    %vm1276 = vmor %vm1274, %vm1275
    %v1277 = vsel %vm1276, %v1269, %v1273
    %v1278 = vand.u32 2147483647, %v1268
    %vm1279 = vcmp.eq.f32.partialorder %v1278, 8.507059e+37
    %v1280 = vand.u32 %v1268, 2147483648
    %v1281 = vor.u32 1.1754944e-38, %v1280
    %v1282 = vsel %vm1279, %v1281, %v1277
    %v1283 = vmul.f32 1.0, %v1282
    %v1284 = vmul.f32 %v1263, %v1135
    %v1285 = vmul.f32 %v1244, %v1264
    %v1286 = vadd.f32 %v1284, %v1285
    %v1287 = vtanh.pop %v1286
    %v1288 = vmul.f32 %v1283, %v1287
    %v1289 = vld [vmem:[#allocation2 + $0xc0] sm:$0xff]
    %v1290 = vld [vmem:[#allocation2 + $0xc8] sm:$0xff]
    %v1291 = vld [vmem:[#allocation2 + $0xd0] sm:$0xff]
    %v1292 = vld [vmem:[#allocation2 + $0xd8] sm:$0xff]
    %1293 = vmatpush.msra.mxu0 %v379
    %1294 = vmatpush.msra.mxu0 %v375
    %1295 = vmatpush.msra.mxu0 %v371
    %1296 = vmatpush.msra.mxu0 %v367
    %1297 = vmatpush.msra.mxu0 %v363
    %1298 = vmatpush.msra.mxu0 %v359
    %1299 = vmatpush.msra.mxu0 %v355
    %1300 = vmatpush.msra.mxu0 %v351
    %1301 = vmatpush.msra.mxu0 %v347
    %1302 = vmatpush.msra.mxu0 %v343
    %1303 = vmatpush.msra.mxu0 %v339
    %1304 = vmatpush.msra.mxu0 %v335
    %1305 = vmatpush.msra.mxu0 %v331
    %1306 = vmatpush.msra.mxu0 %v327
    %1307 = vmatpush.msra.mxu0 %v323
    %1308 = vmatpush.msra.mxu0 %v319
    %1309 = vmatmul.f32.gmra.mxu0 %v1288
    %v1310 = vpop.f32.mrf.mxu0
    %v1311 = vadd.f32 0.0, %v1310
    %1312 = vdwg.mxu0
    %1313 = vmatpush.msra.mxu0 %v380
    %1314 = vmatpush.msra.mxu0 %v376
    %1315 = vmatpush.msra.mxu0 %v372
    %1316 = vmatpush.msra.mxu0 %v368
    %1317 = vmatpush.msra.mxu0 %v364
    %1318 = vmatpush.msra.mxu0 %v360
    %1319 = vmatpush.msra.mxu0 %v356
    %1320 = vmatpush.msra.mxu0 %v352
    %1321 = vmatpush.msra.mxu0 %v348
    %1322 = vmatpush.msra.mxu0 %v344
    %1323 = vmatpush.msra.mxu0 %v340
    %1324 = vmatpush.msra.mxu0 %v336
    %1325 = vmatpush.msra.mxu0 %v332
    %1326 = vmatpush.msra.mxu0 %v328
    %1327 = vmatpush.msra.mxu0 %v324
    %1328 = vmatpush.msra.mxu0 %v320
    %1329 = vmatmul.f32.gmra.mxu0 %v1288
    %v1330 = vpop.f32.mrf.mxu0
    %v1331 = vadd.f32 0.0, %v1330
    %1332 = vdwg.mxu0
    %1333 = vmatpush.msra.mxu0 %v381
    %1334 = vmatpush.msra.mxu0 %v377
    %1335 = vmatpush.msra.mxu0 %v373
    %1336 = vmatpush.msra.mxu0 %v369
    %1337 = vmatpush.msra.mxu0 %v365
    %1338 = vmatpush.msra.mxu0 %v361
    %1339 = vmatpush.msra.mxu0 %v357
    %1340 = vmatpush.msra.mxu0 %v353
    %1341 = vmatpush.msra.mxu0 %v349
    %1342 = vmatpush.msra.mxu0 %v345
    %1343 = vmatpush.msra.mxu0 %v341
    %1344 = vmatpush.msra.mxu0 %v337
    %1345 = vmatpush.msra.mxu0 %v333
    %1346 = vmatpush.msra.mxu0 %v329
    %1347 = vmatpush.msra.mxu0 %v325
    %1348 = vmatpush.msra.mxu0 %v321
    %1349 = vmatmul.f32.gmra.mxu0 %v1288
    %v1350 = vpop.f32.mrf.mxu0
    %v1351 = vadd.f32 0.0, %v1350
    %1352 = vdwg.mxu0
    %1353 = vmatpush.msra.mxu0 %v382
    %1354 = vmatpush.msra.mxu0 %v378
    %1355 = vmatpush.msra.mxu0 %v374
    %1356 = vmatpush.msra.mxu0 %v370
    %1357 = vmatpush.msra.mxu0 %v366
    %1358 = vmatpush.msra.mxu0 %v362
    %1359 = vmatpush.msra.mxu0 %v358
    %1360 = vmatpush.msra.mxu0 %v354
    %1361 = vmatpush.msra.mxu0 %v350
    %1362 = vmatpush.msra.mxu0 %v346
    %1363 = vmatpush.msra.mxu0 %v342
    %1364 = vmatpush.msra.mxu0 %v338
    %1365 = vmatpush.msra.mxu0 %v334
    %1366 = vmatpush.msra.mxu0 %v330
    %1367 = vmatpush.msra.mxu0 %v326
    %1368 = vmatpush.msra.mxu0 %v322
    %1369 = vmatmul.f32.gmra.mxu0 %v1288
    %v1370 = vpop.f32.mrf.mxu0
    %v1371 = vadd.f32 0.0, %v1370
    %1372 = vdwg.mxu0
    %v1373 = vadd.f32 %v1289, %v1311
    %v1374 = vadd.f32 %v1290, %v1331
    %v1375 = vadd.f32 %v1291, %v1351
    %v1376 = vadd.f32 %v1292, %v1371
    %v1377 = vxor.u32 %v1373, 2147483648
    %v1378 = vmul.f32 %v1377, 1.442695
    %v1379 = vpow.pop %v1378
    %v1380 = vadd.f32 %v1379, 1.0
    %v1381 = vrcp.pop %v1380
    %v1382 = vmul.f32 %v1380, %v1381
    %v1383 = vsub.f32 1.0, %v1382
    %v1384 = vmul.f32 %v1381, %v1383
    %v1385 = vadd.f32 %v1381, %v1384
    %vm1386 = vweird.f32 %v1380
    %vm1387 = vweird.f32 %v1381
    %vm1388 = vmor %vm1386, %vm1387
    %v1389 = vsel %vm1388, %v1381, %v1385
    %v1390 = vand.u32 2147483647, %v1380
    %vm1391 = vcmp.eq.f32.partialorder %v1390, 8.507059e+37
    %v1392 = vand.u32 %v1380, 2147483648
    %v1393 = vor.u32 1.1754944e-38, %v1392
    %v1394 = vsel %vm1391, %v1393, %v1389
    %v1395 = vmul.f32 1.0, %v1394
    %v1396 = vxor.u32 %v1374, 2147483648
    %v1397 = vmul.f32 %v1396, 1.442695
    %v1398 = vpow.pop %v1397
    %v1399 = vadd.f32 %v1398, 1.0
    %v1400 = vrcp.pop %v1399
    %v1401 = vmul.f32 %v1399, %v1400
    %v1402 = vsub.f32 1.0, %v1401
    %v1403 = vmul.f32 %v1400, %v1402
    %v1404 = vadd.f32 %v1400, %v1403
    %vm1405 = vweird.f32 %v1399
    %vm1406 = vweird.f32 %v1400
    %vm1407 = vmor %vm1405, %vm1406
    %v1408 = vsel %vm1407, %v1400, %v1404
    %v1409 = vand.u32 2147483647, %v1399
    %vm1410 = vcmp.eq.f32.partialorder %v1409, 8.507059e+37
    %v1411 = vand.u32 %v1399, 2147483648
    %v1412 = vor.u32 1.1754944e-38, %v1411
    %v1413 = vsel %vm1410, %v1412, %v1408
    %v1414 = vmul.f32 1.0, %v1413
    %v1415 = vtanh.pop %v1375
    %v1416 = vxor.u32 %v1376, 2147483648
    %v1417 = vmul.f32 %v1416, 1.442695
    %v1418 = vpow.pop %v1417
    %v1419 = vadd.f32 %v1418, 1.0
    %v1420 = vrcp.pop %v1419
    %v1421 = vmul.f32 %v1419, %v1420
    %v1422 = vsub.f32 1.0, %v1421
    %v1423 = vmul.f32 %v1420, %v1422
    %v1424 = vadd.f32 %v1420, %v1423
    %vm1425 = vweird.f32 %v1419
    %vm1426 = vweird.f32 %v1420
    %vm1427 = vmor %vm1425, %vm1426
    %v1428 = vsel %vm1427, %v1420, %v1424
    %v1429 = vand.u32 2147483647, %v1419
    %vm1430 = vcmp.eq.f32.partialorder %v1429, 8.507059e+37
    %v1431 = vand.u32 %v1419, 2147483648
    %v1432 = vor.u32 1.1754944e-38, %v1431
    %v1433 = vsel %vm1430, %v1432, %v1428
    %v1434 = vmul.f32 1.0, %v1433
    %v1435 = vmul.f32 %v1414, %v1286
    %v1436 = vmul.f32 %v1395, %v1415
    %v1437 = vadd.f32 %v1435, %v1436
    %v1438 = vtanh.pop %v1437
    %v1439 = vmul.f32 %v1434, %v1438
    %v1440 = vld [vmem:[#allocation2 + $0xe0] sm:$0xff]
    %v1441 = vld [vmem:[#allocation2 + $0xe8] sm:$0xff]
    %v1442 = vld [vmem:[#allocation2 + $0xf0] sm:$0xff]
    %v1443 = vld [vmem:[#allocation2 + $0xf8] sm:$0xff]
    %1444 = vmatpush.msra.mxu0 %v379
    %1445 = vmatpush.msra.mxu0 %v375
    %1446 = vmatpush.msra.mxu0 %v371
    %1447 = vmatpush.msra.mxu0 %v367
    %1448 = vmatpush.msra.mxu0 %v363
    %1449 = vmatpush.msra.mxu0 %v359
    %1450 = vmatpush.msra.mxu0 %v355
    %1451 = vmatpush.msra.mxu0 %v351
    %1452 = vmatpush.msra.mxu0 %v347
    %1453 = vmatpush.msra.mxu0 %v343
    %1454 = vmatpush.msra.mxu0 %v339
    %1455 = vmatpush.msra.mxu0 %v335
    %1456 = vmatpush.msra.mxu0 %v331
    %1457 = vmatpush.msra.mxu0 %v327
    %1458 = vmatpush.msra.mxu0 %v323
    %1459 = vmatpush.msra.mxu0 %v319
    %1460 = vmatmul.f32.gmra.mxu0 %v1439
    %v1461 = vpop.f32.mrf.mxu0
    %v1462 = vadd.f32 0.0, %v1461
    %1463 = vdwg.mxu0
    %1464 = vmatpush.msra.mxu0 %v380
    %1465 = vmatpush.msra.mxu0 %v376
    %1466 = vmatpush.msra.mxu0 %v372
    %1467 = vmatpush.msra.mxu0 %v368
    %1468 = vmatpush.msra.mxu0 %v364
    %1469 = vmatpush.msra.mxu0 %v360
    %1470 = vmatpush.msra.mxu0 %v356
    %1471 = vmatpush.msra.mxu0 %v352
    %1472 = vmatpush.msra.mxu0 %v348
    %1473 = vmatpush.msra.mxu0 %v344
    %1474 = vmatpush.msra.mxu0 %v340
    %1475 = vmatpush.msra.mxu0 %v336
    %1476 = vmatpush.msra.mxu0 %v332
    %1477 = vmatpush.msra.mxu0 %v328
    %1478 = vmatpush.msra.mxu0 %v324
    %1479 = vmatpush.msra.mxu0 %v320
    %1480 = vmatmul.f32.gmra.mxu0 %v1439
    %v1481 = vpop.f32.mrf.mxu0
    %v1482 = vadd.f32 0.0, %v1481
    %1483 = vdwg.mxu0
    %1484 = vmatpush.msra.mxu0 %v381
    %1485 = vmatpush.msra.mxu0 %v377
    %1486 = vmatpush.msra.mxu0 %v373
    %1487 = vmatpush.msra.mxu0 %v369
    %1488 = vmatpush.msra.mxu0 %v365
    %1489 = vmatpush.msra.mxu0 %v361
    %1490 = vmatpush.msra.mxu0 %v357
    %1491 = vmatpush.msra.mxu0 %v353
    %1492 = vmatpush.msra.mxu0 %v349
    %1493 = vmatpush.msra.mxu0 %v345
    %1494 = vmatpush.msra.mxu0 %v341
    %1495 = vmatpush.msra.mxu0 %v337
    %1496 = vmatpush.msra.mxu0 %v333
    %1497 = vmatpush.msra.mxu0 %v329
    %1498 = vmatpush.msra.mxu0 %v325
    %1499 = vmatpush.msra.mxu0 %v321
    %1500 = vmatmul.f32.gmra.mxu0 %v1439
    %v1501 = vpop.f32.mrf.mxu0
    %v1502 = vadd.f32 0.0, %v1501
    %1503 = vdwg.mxu0
    %1504 = vmatpush.msra.mxu0 %v382
    %1505 = vmatpush.msra.mxu0 %v378
    %1506 = vmatpush.msra.mxu0 %v374
    %1507 = vmatpush.msra.mxu0 %v370
    %1508 = vmatpush.msra.mxu0 %v366
    %1509 = vmatpush.msra.mxu0 %v362
    %1510 = vmatpush.msra.mxu0 %v358
    %1511 = vmatpush.msra.mxu0 %v354
    %1512 = vmatpush.msra.mxu0 %v350
    %1513 = vmatpush.msra.mxu0 %v346
    %1514 = vmatpush.msra.mxu0 %v342
    %1515 = vmatpush.msra.mxu0 %v338
    %1516 = vmatpush.msra.mxu0 %v334
    %1517 = vmatpush.msra.mxu0 %v330
    %1518 = vmatpush.msra.mxu0 %v326
    %1519 = vmatpush.msra.mxu0 %v322
    %1520 = vmatmul.f32.gmra.mxu0 %v1439
    %v1521 = vpop.f32.mrf.mxu0
    %v1522 = vadd.f32 0.0, %v1521
    %1523 = vdwg.mxu0
    %v1524 = vadd.f32 %v1440, %v1462
    %v1525 = vadd.f32 %v1441, %v1482
    %v1526 = vadd.f32 %v1442, %v1502
    %v1527 = vadd.f32 %v1443, %v1522
    %v1528 = vxor.u32 %v1524, 2147483648
    %v1529 = vmul.f32 %v1528, 1.442695
    %v1530 = vpow.pop %v1529
    %v1531 = vadd.f32 %v1530, 1.0
    %v1532 = vrcp.pop %v1531
    %v1533 = vmul.f32 %v1531, %v1532
    %v1534 = vsub.f32 1.0, %v1533
    %v1535 = vmul.f32 %v1532, %v1534
    %v1536 = vadd.f32 %v1532, %v1535
    %vm1537 = vweird.f32 %v1531
    %vm1538 = vweird.f32 %v1532
    %vm1539 = vmor %vm1537, %vm1538
    %v1540 = vsel %vm1539, %v1532, %v1536
    %v1541 = vand.u32 2147483647, %v1531
    %vm1542 = vcmp.eq.f32.partialorder %v1541, 8.507059e+37
    %v1543 = vand.u32 %v1531, 2147483648
    %v1544 = vor.u32 1.1754944e-38, %v1543
    %v1545 = vsel %vm1542, %v1544, %v1540
    %v1546 = vmul.f32 1.0, %v1545
    %v1547 = vxor.u32 %v1525, 2147483648
    %v1548 = vmul.f32 %v1547, 1.442695
    %v1549 = vpow.pop %v1548
    %v1550 = vadd.f32 %v1549, 1.0
    %v1551 = vrcp.pop %v1550
    %v1552 = vmul.f32 %v1550, %v1551
    %v1553 = vsub.f32 1.0, %v1552
    %v1554 = vmul.f32 %v1551, %v1553
    %v1555 = vadd.f32 %v1551, %v1554
    %vm1556 = vweird.f32 %v1550
    %vm1557 = vweird.f32 %v1551
    %vm1558 = vmor %vm1556, %vm1557
    %v1559 = vsel %vm1558, %v1551, %v1555
    %v1560 = vand.u32 2147483647, %v1550
    %vm1561 = vcmp.eq.f32.partialorder %v1560, 8.507059e+37
    %v1562 = vand.u32 %v1550, 2147483648
    %v1563 = vor.u32 1.1754944e-38, %v1562
    %v1564 = vsel %vm1561, %v1563, %v1559
    %v1565 = vmul.f32 1.0, %v1564
    %v1566 = vtanh.pop %v1526
    %v1567 = vxor.u32 %v1527, 2147483648
    %v1568 = vmul.f32 %v1567, 1.442695
    %v1569 = vpow.pop %v1568
    %v1570 = vadd.f32 %v1569, 1.0
    %v1571 = vrcp.pop %v1570
    %v1572 = vmul.f32 %v1570, %v1571
    %v1573 = vsub.f32 1.0, %v1572
    %v1574 = vmul.f32 %v1571, %v1573
    %v1575 = vadd.f32 %v1571, %v1574
    %vm1576 = vweird.f32 %v1570
    %vm1577 = vweird.f32 %v1571
    %vm1578 = vmor %vm1576, %vm1577
    %v1579 = vsel %vm1578, %v1571, %v1575
    %v1580 = vand.u32 2147483647, %v1570
    %vm1581 = vcmp.eq.f32.partialorder %v1580, 8.507059e+37
    %v1582 = vand.u32 %v1570, 2147483648
    %v1583 = vor.u32 1.1754944e-38, %v1582
    %v1584 = vsel %vm1581, %v1583, %v1579
    %v1585 = vmul.f32 1.0, %v1584
    %v1586 = vmul.f32 %v1565, %v1437
    %v1587 = vmul.f32 %v1546, %v1566
    %v1588 = vadd.f32 %v1586, %v1587
    %v1589 = vtanh.pop %v1588
    %v1590 = vmul.f32 %v1585, %v1589
    %v1591 = vld [vmem:[%s4] sm:$0xff]
    %v1592 = vld [vmem:[%s4 + $0x8] sm:$0xff]
    %v1593 = vld [vmem:[%s4 + $0x10] sm:$0xff]
    %v1594 = vld [vmem:[%s4 + $0x18] sm:$0xff]
    %v1595 = vld [vmem:[%s4 + $0x20] sm:$0xff]
    %v1596 = vld [vmem:[%s4 + $0x28] sm:$0xff]
    %v1597 = vld [vmem:[%s4 + $0x30] sm:$0xff]
    %v1598 = vld [vmem:[%s4 + $0x38] sm:$0xff]
    %v1599 = vld [vmem:[%s4 + $0x40] sm:$0xff]
    %v1600 = vld [vmem:[%s4 + $0x48] sm:$0xff]
    %v1601 = vld [vmem:[%s4 + $0x50] sm:$0xff]
    %v1602 = vld [vmem:[%s4 + $0x58] sm:$0xff]
    %v1603 = vld [vmem:[%s4 + $0x60] sm:$0xff]
    %v1604 = vld [vmem:[%s4 + $0x68] sm:$0xff]
    %v1605 = vld [vmem:[%s4 + $0x70] sm:$0xff]
    %v1606 = vld [vmem:[%s4 + $0x78] sm:$0xff]
    %v1607 = vld [vmem:[%s5] sm:$0x1]
    %v1609 = vperm.slane %v1607, 0
    %1611 = vmatpush.msra.mxu0 %v1606
    %1612 = vmatpush.msra.mxu0 %v1605
    %1613 = vmatpush.msra.mxu0 %v1604
    %1614 = vmatpush.msra.mxu0 %v1603
    %1615 = vmatpush.msra.mxu0 %v1602
    %1616 = vmatpush.msra.mxu0 %v1601
    %1617 = vmatpush.msra.mxu0 %v1600
    %1618 = vmatpush.msra.mxu0 %v1599
    %1619 = vmatpush.msra.mxu0 %v1598
    %1620 = vmatpush.msra.mxu0 %v1597
    %1621 = vmatpush.msra.mxu0 %v1596
    %1622 = vmatpush.msra.mxu0 %v1595
    %1623 = vmatpush.msra.mxu0 %v1594
    %1624 = vmatpush.msra.mxu0 %v1593
    %1625 = vmatpush.msra.mxu0 %v1592
    %1626 = vmatpush.msra.mxu0 %v1591
    %1627 = vmatmul.f32.gmra.mxu0 %v1590
    %v1628 = vpop.f32.mrf.mxu0
    %v1629 = vadd.f32 %v1609, %v1628
    %1630 = vdwg.mxu0
    %1631 = vst [vmem:[%s6] sm:$0xff] %v1629
    // Predicated region
    $region34: #{_forward_impl.1} parent=1 // pred_check
      _
    $region35: #{_forward_impl.1} parent=1 // pred_check_branch
      %1633 = sbr.rel (0) target = $region37
    $region36: #{_forward_impl.1} parent=1 // pred_region
      _
    $region37: #{_forward_impl.1} parent=1 // pred_fallthru
      _
    // Predicated region
    $region38: #{_forward_impl.1} parent=1 // pred_check
      _
    $region39: #{_forward_impl.1} parent=1 // pred_check_branch
      %1635 = sbr.rel (0) target = $region41
    $region40: #{_forward_impl.1} parent=1 // pred_region
      _
    $region41: #{_forward_impl.1} parent=1 // pred_fallthru
      _
    %1636 = vsyncpa [#allocation4], 1
    %1637 = vsyncpa [#allocation6], 1

</llo_original>
